<compile_context>
chip_gen: v5e
topology: v5e:2x2
jax: 0.10.0
libtpu: 0.0.40
codegen_flags: <defaults>
</compile_context>

<pallas_src>
import functools
import math

import jax
import jax.numpy as jnp
from jax.experimental import pallas as pl
from jax.experimental.pallas import tpu as pltpu


def _round_up(x, m):
    return ((x + m - 1) // m) * m


def _vmem_capacity_bytes():
    """Best-effort trace-time VMEM capacity query (defaults to 128 MiB)."""
    try:
        info = pltpu.get_tpu_info()
        for attr in ("vmem_capacity_bytes", "vmem_bytes", "vmem_size_bytes"):
            v = getattr(info, attr, None)
            if v:
                return int(v)
    except Exception:
        pass
    return 128 << 20


def _layernorm_padded(v, gamma, beta, n_valid, eps=1e-5):
    """Fused one-pass LayerNorm over the first `n_valid` lanes of a zero-padded row.

    Pad lanes of `v` are zero, pad lanes of gamma/beta are zero, so pad lanes of the
    result are exactly zero and the statistics match torch.nn.LayerNorm(n_valid).
    """
    inv_n = 1.0 / float(n_valid)
    s1 = jnp.sum(v, axis=-1, keepdims=True)
    s2 = jnp.sum(v * v, axis=-1, keepdims=True)
    mu = s1 * inv_n
    var = jnp.maximum(s2 * inv_n - mu * mu, 0.0)
    return (v - mu) * jax.lax.rsqrt(var + eps) * gamma + beta


def _allset_block_kernel(nb_ref, zcat_ref, expand_ref, qflat_ref, w_ref,
                         g0_ref, b0_ref, g1_ref, b1_ref, out_ref, acc_ref,
                         *, hidden, z_pad):
    """One (target-tile, source-chunk) step of an AllSetTransformerBlock (+ outer ReLU).

    nb_ref     : (tm, tk) int8            neighborhood nonzero pattern tile (streamed)
    zcat_ref   : (tk, z_pad+128) bf16     [exp(a-max)*xV | exp(a-max)] lane-aligned chunk
    expand_ref : (128, z_pad) f32         per-head -> per-lane expansion matrix
    qflat_ref  : (1, z_pad) f32           Q flattened head-major (number_queries == 1)
    w_ref      : (z_pad, z_pad) f32       MLP Linear weight, pre-transposed (y = x @ W^T)
    g*/b*      : (1, z_pad) f32           LayerNorm affine params (zero-padded)
    out_ref    : (tm, z_pad) bf16         lane-dense output slab
    acc_ref    : (tm, z_pad+128) f32      VMEM accumulator across the source chunks
    """
    f32 = jnp.float32
    k = pl.program_id(1)

    @pl.when(k == 0)
    def _():
        acc_ref[...] = jnp.zeros_like(acc_ref)

    # bf16 x bf16 MXU matmul, f32 accumulation (0/1 mask is exact in bf16).
    nb = nb_ref[...].astype(jnp.bfloat16)
    acc_ref[...] += jnp.dot(nb, zcat_ref[...], preferred_element_type=f32)

    @pl.when(k == pl.num_programs(1) - 1)
    def _():
        agg = acc_ref[...]                       # (tm, z_pad+128)
        num = agg[:, :z_pad]                     # sum_{s in N(t)} e^a_s * xV_s  (128-aligned slice)
        den = agg[:, z_pad:]                     # sum_{s in N(t)} e^a_s        (per head, padded)
        den_safe = jnp.where(den > 0.0, den, 1.0)
        inv = jnp.where(den > 0.0, pl.reciprocal(den_safe, approx=False), 0.0)
        # broadcast per-head 1/den across that head's d lanes (tiny lane-dense matmul)
        msg = num * jnp.dot(inv, expand_ref[...], preferred_element_type=f32)

        # + Q residual, LayerNorm0
        h1 = _layernorm_padded(msg + qflat_ref[...], g0_ref[...], b0_ref[...], hidden)
        # 1-layer MLP (Linear, bias=False) -> ReLU -> residual -> LayerNorm1
        mlp = jnp.dot(h1, w_ref[...], preferred_element_type=f32)
        h2 = _layernorm_padded(h1 + jnp.maximum(mlp, 0.0), g1_ref[...], b1_ref[...], hidden)
        # sum over number_queries (=1), then the layer's outer F.relu
        out_ref[...] = jnp.maximum(h2, 0.0).astype(out_ref.dtype)


def allset_block(x_src, nb_mask, params, *, out_dtype=jnp.bfloat16):
    """One AllSetTransformerBlock (+ outer ReLU) via pallas_call.

    x_src   : (n_src, in_ch)  source-cell features (f32 or bf16)
    nb_mask : (n_tgt, n_src)  int8 neighborhood nonzero pattern (0/1)
    """
    n_src, in_ch = x_src.shape
    n_tgt = nb_mask.shape[0]
    K, Q, V = params["K"], params["Q"], params["V"]
    heads, _, d = K.shape
    hidden = heads * d
    z_pad = _round_up(hidden, 128)
    e_pad = 128
    width = z_pad + e_pad

    # ---- source-side projections: hoisted out of the grid, computed ONCE (plain XLA, f32) ----
    Kf = jnp.transpose(K, (1, 0, 2)).reshape(in_ch, hidden)   # fused heads, head-major cols
    Vf = jnp.transpose(V, (1, 0, 2)).reshape(in_ch, hidden)
    x32 = x_src.astype(jnp.float32)
    xK = jnp.dot(x32, Kf)                                     # (n_src, hidden)
    xV = jnp.dot(x32, Vf)                                     # (n_src, hidden)
    alpha = jnp.einsum("shd,hd->sh", xK.reshape(n_src, heads, d), Q)   # (n_src, heads)
    # softmax is shift-invariant: shift by the GLOBAL per-head max (denominator guarded in-kernel).
    # TODO(synk): with extreme per-head logit spread (>~88), exp underflow can zero a whole
    # neighborhood; a per-target-neighborhood max would need a second masked pass.
    ealpha = jnp.exp(alpha - jnp.max(alpha, axis=0, keepdims=True))
    z = (xV.reshape(n_src, heads, d) * ealpha[:, :, None]).reshape(n_src, hidden)
    # lane-aligned bf16 payload: [z | ealpha], each segment padded to a 128-lane boundary
    zcat = jnp.concatenate(
        [jnp.pad(z, ((0, 0), (0, z_pad - hidden))),
         jnp.pad(ealpha, ((0, 0), (0, e_pad - heads)))], axis=-1).astype(jnp.bfloat16)

    # ---- lane-aligned, zero-padded parameters (pad lanes stay exactly 0 through the block) ----
    pw = z_pad - hidden
    qflat = jnp.pad(params["Qflat"], ((0, 0), (0, pw))).astype(jnp.float32)
    w_t = jnp.pad(params["W_T"], ((0, pw), (0, pw))).astype(jnp.float32)
    ln0_g = jnp.pad(params["ln0_g"], ((0, 0), (0, pw)))
    ln0_b = jnp.pad(params["ln0_b"], ((0, 0), (0, pw)))
    ln1_g = jnp.pad(params["ln1_g"], ((0, 0), (0, pw)))
    ln1_b = jnp.pad(params["ln1_b"], ((0, 0), (0, pw)))
    lane_head = jnp.arange(z_pad) // d
    expand = ((jnp.arange(e_pad)[:, None] == lane_head[None, :])
              & (jnp.arange(z_pad)[None, :] < hidden)).astype(jnp.float32)   # (128, z_pad)

    # ---- generation-gated tile selection & VMEM budget ----
    vmem_cap = _vmem_capacity_bytes()
    if vmem_cap <= (64 << 20):                    # v7x-class: 64 MiB VMEM, 2 TensorCores
        work_budget, vmem_cap_limit, tm = 26 << 20, 40 << 20, 256
    else:                                         # v5e / v6e: 128 MiB VMEM
        work_budget, vmem_cap_limit, tm = 90 << 20, 96 << 20, 512

    tk = min(_round_up(n_src, 128), 8192)

    def vmem_est(tm_, tk_):
        # Accounts for: f32 accumulator, double-buffered bf16 output, double-buffered int8 nb
        # stream, bf16 zcat stream (single-buffered when fully resident), single-buffered
        # invariant residents (Buffered(1)), the in-kernel bf16 cast temp and epilogue temps.
        n_k_ = pl.cdiv(n_src, tk_)
        acc = tm_ * width * 4
        outb = 2 * tm_ * z_pad * 2
        nbb = 2 * tm_ * tk_ * 1
        zcb = (2 if n_k_ > 1 else 1) * tk_ * width * 2
        res = (e_pad * z_pad + z_pad * z_pad + 5 * z_pad) * 4
        tmp = tm_ * tk_ * 2 + 6 * tm_ * width * 4
        return acc + outb + nbb + zcb + res + tmp

    while vmem_est(tm, tk) > work_budget and (tm > 64 or tk > 128):
        if tk >= 2 * tm and tk > 128:
            tk = max(128, _round_up(tk // 2, 128))
        elif tm > 64:
            tm //= 2
        else:
            tk = max(128, _round_up(tk // 2, 128))

    tm = min(tm, _round_up(n_tgt, 8))
    # Give dual-TensorCore chips (and the DMA pipeline) >= 2 grid steps along targets when
    # the graph is large enough to make it worthwhile.
    while tm > 128 and pl.cdiv(n_tgt, tm) < 2:
        tm //= 2
    tm = max(8, tm)

    n_tgt_pad = _round_up(n_tgt, tm)
    n_src_pad = _round_up(n_src, tk)
    n_i, n_k = n_tgt_pad // tm, n_src_pad // tk

    nb_p = jnp.pad(nb_mask, ((0, n_tgt_pad - n_tgt), (0, n_src_pad - n_src)))
    zcat_p = jnp.pad(zcat, ((0, n_src_pad - n_src), (0, 0)))   # padded sources: e^a = 0 -> no-op

    vmem_limit = int(min(vmem_cap_limit, max(vmem_est(tm, tk) * 5 // 4, 16 << 20)))

    def const_spec(shape):
        # invariant operand: constant index_map + single-buffered (no useless double-buffer)
        return pl.BlockSpec(shape, lambda i, k: (0, 0), pipeline_mode=pl.Buffered(1))

    # TODO(synk): if xprof shows the int8 nb stream still exposed (wall >> compute), bump the
    # nb BlockSpec to pipeline_mode=pl.Buffered(3) and/or bit-pack the mask 8 cols per byte.
    nb_spec = pl.BlockSpec((tm, tk), lambda i, k: (i, k))
    if n_k == 1:
        zcat_spec = pl.BlockSpec((tk, width), lambda i, k: (0, 0), pipeline_mode=pl.Buffered(1))
    else:
        zcat_spec = pl.BlockSpec((tk, width), lambda i, k: (k, 0))

    out = pl.pallas_call(
        functools.partial(_allset_block_kernel, hidden=hidden, z_pad=z_pad),
        out_shape=jax.ShapeDtypeStruct((n_tgt_pad, z_pad), out_dtype),
        grid=(n_i, n_k),
        in_specs=[
            nb_spec,                       # (tm, tk) int8 neighborhood tile (streamed)
            zcat_spec,                     # (tk, width) bf16 source payload chunk
            const_spec((e_pad, z_pad)),    # head -> lane expansion
            const_spec((1, z_pad)),        # Q flat residual
            const_spec((z_pad, z_pad)),    # MLP weight^T
            const_spec((1, z_pad)),        # ln0 gamma
            const_spec((1, z_pad)),        # ln0 beta
            const_spec((1, z_pad)),        # ln1 gamma
            const_spec((1, z_pad)),        # ln1 beta
        ],
        out_specs=pl.BlockSpec((tm, z_pad), lambda i, k: (i, 0)),
        scratch_shapes=[pltpu.VMEM((tm, width), jnp.float32)],
        compiler_params=pltpu.CompilerParams(
            dimension_semantics=("parallel", "arbitrary"),
            vmem_limit_bytes=vmem_limit),
    )(nb_p, zcat_p, expand, qflat, w_t, ln0_g, ln0_b, ln1_g, ln1_b)
    return out[:n_tgt, :hidden]


@jax.jit
def allset_transformer_layer(x, incidence_1, params_v2e, params_e2v):
    """AllSetTransformerLayer.forward (dropout p=0.0 -> identity)."""
    # Only the nonzero pattern of the incidence matters (torch.sparse indices semantics).
    inc_mask = (incidence_1 != 0).astype(jnp.int8)            # (n_nodes, n_hyperedges)
    # vertex -> edge : neighborhood = incidence^T  (n_edges x n_nodes)
    x_e = allset_block(x, inc_mask.T, params_v2e)             # bf16 inter-block activations
    # TODO(synk): F.dropout with p>0 not implemented (default p=0.0 is identity).
    # edge -> vertex : neighborhood = incidence    (n_nodes x n_edges)
    x_v = allset_block(x_e, inc_mask, params_e2v)
    return x_v.astype(jnp.float32)


def init_block_params(key, in_ch, hidden, heads, number_queries=1, gain=1.414):
    """Deterministic synthetic init matching the module's parameter shapes."""
    assert number_queries == 1, "kernel implements the default number_queries=1"
    d = hidden // heads
    ks = jax.random.split(key, 4)

    def xavier(k, shape, fan_in, fan_out):
        bound = gain * math.sqrt(6.0 / (fan_in + fan_out))
        return jax.random.uniform(k, shape, jnp.float32, -bound, bound)

    K = xavier(ks[0], (heads, in_ch, d), in_ch * d, heads * d)
    Qfull = xavier(ks[1], (heads, 1, d), d, heads * d)          # (heads, nq, d)
    V = xavier(ks[2], (heads, in_ch, d), in_ch * d, heads * d)
    b = 1.0 / math.sqrt(hidden)
    W = jax.random.uniform(ks[3], (hidden, hidden), jnp.float32, -b, b)  # torch (out, in)

    return dict(
        K=K, Q=Qfull[:, 0, :], V=V,
        Qflat=Qfull.reshape(1, heads * d),     # head-major flatten == permute+reshape in torch
        W_T=W.T,                               # so MLP is h1 @ W_T == torch Linear (bias=False)
        ln0_g=jnp.ones((1, hidden), jnp.float32), ln0_b=jnp.zeros((1, hidden), jnp.float32),
        ln1_g=jnp.ones((1, hidden), jnp.float32), ln1_b=jnp.zeros((1, hidden), jnp.float32),
    )


if __name__ == "__main__":
    key = jax.random.PRNGKey(0)
    n_nodes, n_edges = 16, 8
    in_channels, hidden_channels, heads = 16, 32, 4

    kx, kinc, kp1, kp2 = jax.random.split(key, 4)
    x = jax.random.normal(kx, (n_nodes, in_channels), jnp.float32)

    # random sparse-ish incidence (n_nodes, n_hyperedges); guarantee every node is in
    # >=1 hyperedge and every hyperedge has >=1 node.
    inc = (jax.random.uniform(kinc, (n_nodes, n_edges)) < 0.4).astype(jnp.float32)
    inc = jnp.maximum(inc, jax.nn.one_hot(jnp.arange(n_nodes) % n_edges, n_edges,
                                          dtype=jnp.float32))

    params_v2e = init_block_params(kp1, in_channels, hidden_channels, heads)
    params_e2v = init_block_params(kp2, hidden_channels, hidden_channels, heads)

    out = allset_transformer_layer(x, inc, params_v2e, params_e2v)
    out = jax.block_until_ready(out)

    assert out.shape == (n_nodes, hidden_channels), out.shape
    assert bool(jnp.all(jnp.isfinite(out)))
    assert bool(jnp.all(out >= 0.0))  # final ReLU
    print("KERNEL_OK")
</pallas_src>

<mosaic_0001>
module attributes {stable_mosaic.version = 11 : i64} {
  func.func @_allset_block_kernel(%arg0: i32, %arg1: i32, %arg2: memref<8x128xi8, #tpu.memory_space<vmem>>, %arg3: memref<128x256xbf16, #tpu.memory_space<vmem>>, %arg4: memref<128x128xf32, #tpu.memory_space<vmem>>, %arg5: memref<1x128xf32, #tpu.memory_space<vmem>>, %arg6: memref<128x128xf32, #tpu.memory_space<vmem>>, %arg7: memref<1x128xf32, #tpu.memory_space<vmem>>, %arg8: memref<1x128xf32, #tpu.memory_space<vmem>>, %arg9: memref<1x128xf32, #tpu.memory_space<vmem>>, %arg10: memref<1x128xf32, #tpu.memory_space<vmem>>, %arg11: memref<8x128xbf16, #tpu.memory_space<vmem>>, %arg12: memref<8x256xf32, #tpu.memory_space<vmem>>) attributes {dimension_semantics = [#tpu.dimension_semantics<parallel>, #tpu.dimension_semantics<arbitrary>], iteration_bounds = array<i64: 1, 1>, scalar_prefetch = 0 : i64, scratch_operands = 1 : i64, tpu.core_type = #tpu.core_type<tc>, window_params = [{transform_indices = @transform_0, window_bounds = array<i64: 8, 128>}, {pipeline_mode = #tpu.pipeline_mode<synchronous>, transform_indices = @transform_1, window_bounds = array<i64: 128, 256>}, {pipeline_mode = #tpu.pipeline_mode<synchronous>, transform_indices = @transform_2, window_bounds = array<i64: 128, 128>}, {pipeline_mode = #tpu.pipeline_mode<synchronous>, transform_indices = @transform_3, window_bounds = array<i64: 1, 128>}, {pipeline_mode = #tpu.pipeline_mode<synchronous>, transform_indices = @transform_4, window_bounds = array<i64: 128, 128>}, {pipeline_mode = #tpu.pipeline_mode<synchronous>, transform_indices = @transform_5, window_bounds = array<i64: 1, 128>}, {pipeline_mode = #tpu.pipeline_mode<synchronous>, transform_indices = @transform_6, window_bounds = array<i64: 1, 128>}, {pipeline_mode = #tpu.pipeline_mode<synchronous>, transform_indices = @transform_7, window_bounds = array<i64: 1, 128>}, {pipeline_mode = #tpu.pipeline_mode<synchronous>, transform_indices = @transform_8, window_bounds = array<i64: 1, 128>}, {transform_indices = @transform_9, window_bounds = array<i64: 8, 128>}]} {
    %c0_i32 = arith.constant 0 : i32
    %0 = arith.cmpi eq, %arg1, %c0_i32 : i32
    %1 = arith.extui %0 : i1 to i32
    %c0_i32_0 = arith.constant 0 : i32
    %2 = arith.cmpi ne, %1, %c0_i32_0 : i32
    scf.if %2 {
      %cst_10 = arith.constant 0.000000e+00 : f32
      %13 = vector.broadcast %cst_10 : f32 to vector<8x256xf32>
      %c0_11 = arith.constant 0 : index
      %c0_12 = arith.constant 0 : index
      %14 = vector.load %arg12[%c0_11, %c0_12] : memref<8x256xf32, #tpu.memory_space<vmem>>, vector<8x256xf32>
      tpu.vector_store %arg12[%c0_11, %c0_12], %13 {strides = array<i32>} : memref<8x256xf32, #tpu.memory_space<vmem>>, vector<8x256xf32>,
    } else {
    }
    %c0 = arith.constant 0 : index
    %c0_1 = arith.constant 0 : index
    %3 = vector.load %arg2[%c0, %c0_1] : memref<8x128xi8, #tpu.memory_space<vmem>>, vector<8x128xi8>
    %4 = arith.sitofp %3 : vector<8x128xi8> to vector<8x128xbf16>
    %c0_2 = arith.constant 0 : index
    %c0_3 = arith.constant 0 : index
    %5 = vector.load %arg12[%c0_2, %c0_3] : memref<8x256xf32, #tpu.memory_space<vmem>>, vector<8x256xf32>
    %c0_4 = arith.constant 0 : index
    %c0_5 = arith.constant 0 : index
    %6 = vector.load %arg3[%c0_4, %c0_5] : memref<128x256xbf16, #tpu.memory_space<vmem>>, vector<128x256xbf16>
    %cst = arith.constant dense<0.000000e+00> : vector<8x256xf32>
    %7 = tpu.matmul %4, %6, %cst {dimension_numbers = #tpu.dot_dimension_numbers<[1], [0], [0], [1], [0, 0, 1, 1], [], []>} : vector<8x128xbf16>, vector<128x256xbf16>, vector<8x256xf32> -> vector<8x256xf32>
    %8 = arith.addf %5, %7 : vector<8x256xf32>
    %c0_6 = arith.constant 0 : index
    %c0_7 = arith.constant 0 : index
    %9 = vector.load %arg12[%c0_6, %c0_7] : memref<8x256xf32, #tpu.memory_space<vmem>>, vector<8x256xf32>
    tpu.vector_store %arg12[%c0_6, %c0_7], %8 {strides = array<i32>} : memref<8x256xf32, #tpu.memory_space<vmem>>, vector<8x256xf32>,
    %c0_i32_8 = arith.constant 0 : i32
    %10 = arith.cmpi eq, %arg1, %c0_i32_8 : i32
    %11 = arith.extui %10 : i1 to i32
    %c0_i32_9 = arith.constant 0 : i32
    %12 = arith.cmpi ne, %11, %c0_i32_9 : i32
    scf.if %12 {
      %c0_10 = arith.constant 0 : index
      %c0_11 = arith.constant 0 : index
      %13 = vector.load %arg12[%c0_10, %c0_11] : memref<8x256xf32, #tpu.memory_space<vmem>>, vector<8x256xf32>
      %14 = vector.extract_strided_slice %13 {offsets = [0, 0], sizes = [8, 128], strides = [1, 1]} : vector<8x256xf32> to vector<8x128xf32>
      %15 = vector.extract_strided_slice %13 {offsets = [0, 128], sizes = [8, 128], strides = [1, 1]} : vector<8x256xf32> to vector<8x128xf32>
      %cst_12 = arith.constant 0.000000e+00 : f32
      %16 = vector.broadcast %cst_12 : f32 to vector<8x128xf32>
      %17 = arith.cmpf ogt, %15, %16 : vector<8x128xf32>
      %cst_13 = arith.constant 1.000000e+00 : f32
      %18 = vector.broadcast %cst_13 : f32 to vector<8x128xf32>
      %19 = arith.select %17, %15, %18 : vector<8x128xi1>, vector<8x128xf32>
      %cst_14 = arith.constant 0.000000e+00 : f32
      %20 = vector.broadcast %cst_14 : f32 to vector<8x128xf32>
      %21 = arith.cmpf ogt, %15, %20 : vector<8x128xf32>
      %22 = tpu.reciprocal %19 : vector<8x128xf32> -> vector<8x128xf32>
      %cst_15 = arith.constant 0.000000e+00 : f32
      %23 = vector.broadcast %cst_15 : f32 to vector<8x128xf32>
      %24 = arith.select %21, %22, %23 : vector<8x128xi1>, vector<8x128xf32>
      %c0_16 = arith.constant 0 : index
      %c0_17 = arith.constant 0 : index
      %25 = vector.load %arg4[%c0_16, %c0_17] : memref<128x128xf32, #tpu.memory_space<vmem>>, vector<128x128xf32>
      %cst_18 = arith.constant dense<0.000000e+00> : vector<8x128xf32>
      %26 = tpu.matmul %24, %25, %cst_18 {dimension_numbers = #tpu.dot_dimension_numbers<[1], [0], [0], [1], [0, 0, 1, 1], [], []>} : vector<8x128xf32>, vector<128x128xf32>, vector<8x128xf32> -> vector<8x128xf32>
      %27 = arith.mulf %14, %26 : vector<8x128xf32>
      %c0_19 = arith.constant 0 : index
      %c0_20 = arith.constant 0 : index
      %28 = vector.load %arg5[%c0_19, %c0_20] : memref<1x128xf32, #tpu.memory_space<vmem>>, vector<1x128xf32>
      %29 = vector.broadcast %28 : vector<1x128xf32> to vector<8x128xf32>
      %30 = arith.addf %27, %29 : vector<8x128xf32>
      %c0_21 = arith.constant 0 : index
      %c0_22 = arith.constant 0 : index
      %31 = vector.load %arg7[%c0_21, %c0_22] : memref<1x128xf32, #tpu.memory_space<vmem>>, vector<1x128xf32>
      %c0_23 = arith.constant 0 : index
      %c0_24 = arith.constant 0 : index
      %32 = vector.load %arg8[%c0_23, %c0_24] : memref<1x128xf32, #tpu.memory_space<vmem>>, vector<1x128xf32>
      %cst_25 = arith.constant dense<0.000000e+00> : vector<8xf32>
      %33 = vector.multi_reduction <add>, %30, %cst_25 [1] : vector<8x128xf32> to vector<8xf32>
      %34 = vector.shape_cast %33 : vector<8xf32> to vector<8x1xf32>
      %35 = arith.mulf %30, %30 : vector<8x128xf32>
      %cst_26 = arith.constant dense<0.000000e+00> : vector<8xf32>
      %36 = vector.multi_reduction <add>, %35, %cst_26 [1] : vector<8x128xf32> to vector<8xf32>
      %37 = vector.shape_cast %36 : vector<8xf32> to vector<8x1xf32>
      %cst_27 = arith.constant 3.125000e-02 : f32
      %38 = vector.broadcast %cst_27 : f32 to vector<8x1xf32>
      %39 = arith.mulf %34, %38 : vector<8x1xf32>
      %cst_28 = arith.constant 3.125000e-02 : f32
      %40 = vector.broadcast %cst_28 : f32 to vector<8x1xf32>
      %41 = arith.mulf %37, %40 : vector<8x1xf32>
      %42 = arith.mulf %39, %39 : vector<8x1xf32>
      %43 = arith.subf %41, %42 : vector<8x1xf32>
      %cst_29 = arith.constant 0.000000e+00 : f32
      %44 = vector.broadcast %cst_29 : f32 to vector<8x1xf32>
      %45 = arith.maximumf %43, %44 : vector<8x1xf32>
      %46 = vector.broadcast %39 : vector<8x1xf32> to vector<8x128xf32>
      %47 = arith.subf %30, %46 : vector<8x128xf32>
      %cst_30 = arith.constant 9.99999974E-6 : f32
      %48 = vector.broadcast %cst_30 : f32 to vector<8x1xf32>
      %49 = arith.addf %45, %48 : vector<8x1xf32>
      %50 = math.rsqrt %49 : vector<8x1xf32>
      %51 = vector.broadcast %50 : vector<8x1xf32> to vector<8x128xf32>
      %52 = arith.mulf %47, %51 : vector<8x128xf32>
      %53 = vector.broadcast %31 : vector<1x128xf32> to vector<8x128xf32>
      %54 = arith.mulf %52, %53 : vector<8x128xf32>
      %55 = vector.broadcast %32 : vector<1x128xf32> to vector<8x128xf32>
      %56 = arith.addf %54, %55 : vector<8x128xf32>
      %c0_31 = arith.constant 0 : index
      %c0_32 = arith.constant 0 : index
      %57 = vector.load %arg6[%c0_31, %c0_32] : memref<128x128xf32, #tpu.memory_space<vmem>>, vector<128x128xf32>
      %cst_33 = arith.constant dense<0.000000e+00> : vector<8x128xf32>
      %58 = tpu.matmul %56, %57, %cst_33 {dimension_numbers = #tpu.dot_dimension_numbers<[1], [0], [0], [1], [0, 0, 1, 1], [], []>} : vector<8x128xf32>, vector<128x128xf32>, vector<8x128xf32> -> vector<8x128xf32>
      %cst_34 = arith.constant 0.000000e+00 : f32
      %59 = vector.broadcast %cst_34 : f32 to vector<8x128xf32>
      %60 = arith.maximumf %58, %59 : vector<8x128xf32>
      %61 = arith.addf %56, %60 : vector<8x128xf32>
      %c0_35 = arith.constant 0 : index
      %c0_36 = arith.constant 0 : index
      %62 = vector.load %arg9[%c0_35, %c0_36] : memref<1x128xf32, #tpu.memory_space<vmem>>, vector<1x128xf32>
      %c0_37 = arith.constant 0 : index
      %c0_38 = arith.constant 0 : index
      %63 = vector.load %arg10[%c0_37, %c0_38] : memref<1x128xf32, #tpu.memory_space<vmem>>, vector<1x128xf32>
      %cst_39 = arith.constant dense<0.000000e+00> : vector<8xf32>
      %64 = vector.multi_reduction <add>, %61, %cst_39 [1] : vector<8x128xf32> to vector<8xf32>
      %65 = vector.shape_cast %64 : vector<8xf32> to vector<8x1xf32>
      %66 = arith.mulf %61, %61 : vector<8x128xf32>
      %cst_40 = arith.constant dense<0.000000e+00> : vector<8xf32>
      %67 = vector.multi_reduction <add>, %66, %cst_40 [1] : vector<8x128xf32> to vector<8xf32>
      %68 = vector.shape_cast %67 : vector<8xf32> to vector<8x1xf32>
      %cst_41 = arith.constant 3.125000e-02 : f32
      %69 = vector.broadcast %cst_41 : f32 to vector<8x1xf32>
      %70 = arith.mulf %65, %69 : vector<8x1xf32>
      %cst_42 = arith.constant 3.125000e-02 : f32
      %71 = vector.broadcast %cst_42 : f32 to vector<8x1xf32>
      %72 = arith.mulf %68, %71 : vector<8x1xf32>
      %73 = arith.mulf %70, %70 : vector<8x1xf32>
      %74 = arith.subf %72, %73 : vector<8x1xf32>
      %cst_43 = arith.constant 0.000000e+00 : f32
      %75 = vector.broadcast %cst_43 : f32 to vector<8x1xf32>
      %76 = arith.maximumf %74, %75 : vector<8x1xf32>
      %77 = vector.broadcast %70 : vector<8x1xf32> to vector<8x128xf32>
      %78 = arith.subf %61, %77 : vector<8x128xf32>
      %cst_44 = arith.constant 9.99999974E-6 : f32
      %79 = vector.broadcast %cst_44 : f32 to vector<8x1xf32>
      %80 = arith.addf %76, %79 : vector<8x1xf32>
      %81 = math.rsqrt %80 : vector<8x1xf32>
      %82 = vector.broadcast %81 : vector<8x1xf32> to vector<8x128xf32>
      %83 = arith.mulf %78, %82 : vector<8x128xf32>
      %84 = vector.broadcast %62 : vector<1x128xf32> to vector<8x128xf32>
      %85 = arith.mulf %83, %84 : vector<8x128xf32>
      %86 = vector.broadcast %63 : vector<1x128xf32> to vector<8x128xf32>
      %87 = arith.addf %85, %86 : vector<8x128xf32>
      %cst_45 = arith.constant 0.000000e+00 : f32
      %88 = vector.broadcast %cst_45 : f32 to vector<8x128xf32>
      %89 = arith.maximumf %87, %88 : vector<8x128xf32>
      %90 = arith.truncf %89 : vector<8x128xf32> to vector<8x128xbf16>
      %c0_46 = arith.constant 0 : index
      %c0_47 = arith.constant 0 : index
      %91 = vector.load %arg11[%c0_46, %c0_47] : memref<8x128xbf16, #tpu.memory_space<vmem>>, vector<8x128xbf16>
      tpu.vector_store %arg11[%c0_46, %c0_47], %90 {strides = array<i32>} : memref<8x128xbf16, #tpu.memory_space<vmem>>, vector<8x128xbf16>,
    } else {
    }
    return
  }
  func.func @transform_0(%arg0: i32, %arg1: i32) -> (i32, i32) {
    %c0_i32 = arith.constant 0 : i32
    return %arg0, %arg1 : i32, i32
  }
  func.func @transform_1(%arg0: i32, %arg1: i32) -> (i32, i32) {
    %c0_i32 = arith.constant 0 : i32
    %c0_i32_0 = arith.constant 0 : i32
    %c0_i32_1 = arith.constant 0 : i32
    return %c0_i32, %c0_i32_0 : i32, i32
  }
  func.func @transform_2(%arg0: i32, %arg1: i32) -> (i32, i32) {
    %c0_i32 = arith.constant 0 : i32
    %c0_i32_0 = arith.constant 0 : i32
    %c0_i32_1 = arith.constant 0 : i32
    return %c0_i32, %c0_i32_0 : i32, i32
  }
  func.func @transform_3(%arg0: i32, %arg1: i32) -> (i32, i32) {
    %c0_i32 = arith.constant 0 : i32
    %c0_i32_0 = arith.constant 0 : i32
    %c0_i32_1 = arith.constant 0 : i32
    return %c0_i32, %c0_i32_0 : i32, i32
  }
  func.func @transform_4(%arg0: i32, %arg1: i32) -> (i32, i32) {
    %c0_i32 = arith.constant 0 : i32
    %c0_i32_0 = arith.constant 0 : i32
    %c0_i32_1 = arith.constant 0 : i32
    return %c0_i32, %c0_i32_0 : i32, i32
  }
  func.func @transform_5(%arg0: i32, %arg1: i32) -> (i32, i32) {
    %c0_i32 = arith.constant 0 : i32
    %c0_i32_0 = arith.constant 0 : i32
    %c0_i32_1 = arith.constant 0 : i32
    return %c0_i32, %c0_i32_0 : i32, i32
  }
  func.func @transform_6(%arg0: i32, %arg1: i32) -> (i32, i32) {
    %c0_i32 = arith.constant 0 : i32
    %c0_i32_0 = arith.constant 0 : i32
    %c0_i32_1 = arith.constant 0 : i32
    return %c0_i32, %c0_i32_0 : i32, i32
  }
  func.func @transform_7(%arg0: i32, %arg1: i32) -> (i32, i32) {
    %c0_i32 = arith.constant 0 : i32
    %c0_i32_0 = arith.constant 0 : i32
    %c0_i32_1 = arith.constant 0 : i32
    return %c0_i32, %c0_i32_0 : i32, i32
  }
  func.func @transform_8(%arg0: i32, %arg1: i32) -> (i32, i32) {
    %c0_i32 = arith.constant 0 : i32
    %c0_i32_0 = arith.constant 0 : i32
    %c0_i32_1 = arith.constant 0 : i32
    return %c0_i32, %c0_i32_0 : i32, i32
  }
  func.func @transform_9(%arg0: i32, %arg1: i32) -> (i32, i32) {
    %c0_i32 = arith.constant 0 : i32
    %c0_i32_0 = arith.constant 0 : i32
    return %arg0, %c0_i32 : i32, i32
  }
}

module attributes {stable_mosaic.version = 11 : i64} {
  func.func @_allset_block_kernel(%arg0: i32, %arg1: i32, %arg2: memref<16x128xi8, #tpu.memory_space<vmem>>, %arg3: memref<128x256xbf16, #tpu.memory_space<vmem>>, %arg4: memref<128x128xf32, #tpu.memory_space<vmem>>, %arg5: memref<1x128xf32, #tpu.memory_space<vmem>>, %arg6: memref<128x128xf32, #tpu.memory_space<vmem>>, %arg7: memref<1x128xf32, #tpu.memory_space<vmem>>, %arg8: memref<1x128xf32, #tpu.memory_space<vmem>>, %arg9: memref<1x128xf32, #tpu.memory_space<vmem>>, %arg10: memref<1x128xf32, #tpu.memory_space<vmem>>, %arg11: memref<16x128xbf16, #tpu.memory_space<vmem>>, %arg12: memref<16x256xf32, #tpu.memory_space<vmem>>) attributes {dimension_semantics = [#tpu.dimension_semantics<parallel>, #tpu.dimension_semantics<arbitrary>], iteration_bounds = array<i64: 1, 1>, scalar_prefetch = 0 : i64, scratch_operands = 1 : i64, tpu.core_type = #tpu.core_type<tc>, window_params = [{transform_indices = @transform_0, window_bounds = array<i64: 16, 128>}, {pipeline_mode = #tpu.pipeline_mode<synchronous>, transform_indices = @transform_1, window_bounds = array<i64: 128, 256>}, {pipeline_mode = #tpu.pipeline_mode<synchronous>, transform_indices = @transform_2, window_bounds = array<i64: 128, 128>}, {pipeline_mode = #tpu.pipeline_mode<synchronous>, transform_indices = @transform_3, window_bounds = array<i64: 1, 128>}, {pipeline_mode = #tpu.pipeline_mode<synchronous>, transform_indices = @transform_4, window_bounds = array<i64: 128, 128>}, {pipeline_mode = #tpu.pipeline_mode<synchronous>, transform_indices = @transform_5, window_bounds = array<i64: 1, 128>}, {pipeline_mode = #tpu.pipeline_mode<synchronous>, transform_indices = @transform_6, window_bounds = array<i64: 1, 128>}, {pipeline_mode = #tpu.pipeline_mode<synchronous>, transform_indices = @transform_7, window_bounds = array<i64: 1, 128>}, {pipeline_mode = #tpu.pipeline_mode<synchronous>, transform_indices = @transform_8, window_bounds = array<i64: 1, 128>}, {transform_indices = @transform_9, window_bounds = array<i64: 16, 128>}]} {
    %c0_i32 = arith.constant 0 : i32
    %0 = arith.cmpi eq, %arg1, %c0_i32 : i32
    %1 = arith.extui %0 : i1 to i32
    %c0_i32_0 = arith.constant 0 : i32
    %2 = arith.cmpi ne, %1, %c0_i32_0 : i32
    scf.if %2 {
      %cst_10 = arith.constant 0.000000e+00 : f32
      %13 = vector.broadcast %cst_10 : f32 to vector<16x256xf32>
      %c0_11 = arith.constant 0 : index
      %c0_12 = arith.constant 0 : index
      %14 = vector.load %arg12[%c0_11, %c0_12] : memref<16x256xf32, #tpu.memory_space<vmem>>, vector<16x256xf32>
      tpu.vector_store %arg12[%c0_11, %c0_12], %13 {strides = array<i32>} : memref<16x256xf32, #tpu.memory_space<vmem>>, vector<16x256xf32>,
    } else {
    }
    %c0 = arith.constant 0 : index
    %c0_1 = arith.constant 0 : index
    %3 = vector.load %arg2[%c0, %c0_1] : memref<16x128xi8, #tpu.memory_space<vmem>>, vector<16x128xi8>
    %4 = arith.sitofp %3 : vector<16x128xi8> to vector<16x128xbf16>
    %c0_2 = arith.constant 0 : index
    %c0_3 = arith.constant 0 : index
    %5 = vector.load %arg12[%c0_2, %c0_3] : memref<16x256xf32, #tpu.memory_space<vmem>>, vector<16x256xf32>
    %c0_4 = arith.constant 0 : index
    %c0_5 = arith.constant 0 : index
    %6 = vector.load %arg3[%c0_4, %c0_5] : memref<128x256xbf16, #tpu.memory_space<vmem>>, vector<128x256xbf16>
    %cst = arith.constant dense<0.000000e+00> : vector<16x256xf32>
    %7 = tpu.matmul %4, %6, %cst {dimension_numbers = #tpu.dot_dimension_numbers<[1], [0], [0], [1], [0, 0, 1, 1], [], []>} : vector<16x128xbf16>, vector<128x256xbf16>, vector<16x256xf32> -> vector<16x256xf32>
    %8 = arith.addf %5, %7 : vector<16x256xf32>
    %c0_6 = arith.constant 0 : index
    %c0_7 = arith.constant 0 : index
    %9 = vector.load %arg12[%c0_6, %c0_7] : memref<16x256xf32, #tpu.memory_space<vmem>>, vector<16x256xf32>
    tpu.vector_store %arg12[%c0_6, %c0_7], %8 {strides = array<i32>} : memref<16x256xf32, #tpu.memory_space<vmem>>, vector<16x256xf32>,
    %c0_i32_8 = arith.constant 0 : i32
    %10 = arith.cmpi eq, %arg1, %c0_i32_8 : i32
    %11 = arith.extui %10 : i1 to i32
    %c0_i32_9 = arith.constant 0 : i32
    %12 = arith.cmpi ne, %11, %c0_i32_9 : i32
    scf.if %12 {
      %c0_10 = arith.constant 0 : index
      %c0_11 = arith.constant 0 : index
      %13 = vector.load %arg12[%c0_10, %c0_11] : memref<16x256xf32, #tpu.memory_space<vmem>>, vector<16x256xf32>
      %14 = vector.extract_strided_slice %13 {offsets = [0, 0], sizes = [16, 128], strides = [1, 1]} : vector<16x256xf32> to vector<16x128xf32>
      %15 = vector.extract_strided_slice %13 {offsets = [0, 128], sizes = [16, 128], strides = [1, 1]} : vector<16x256xf32> to vector<16x128xf32>
      %cst_12 = arith.constant 0.000000e+00 : f32
      %16 = vector.broadcast %cst_12 : f32 to vector<16x128xf32>
      %17 = arith.cmpf ogt, %15, %16 : vector<16x128xf32>
      %cst_13 = arith.constant 1.000000e+00 : f32
      %18 = vector.broadcast %cst_13 : f32 to vector<16x128xf32>
      %19 = arith.select %17, %15, %18 : vector<16x128xi1>, vector<16x128xf32>
      %cst_14 = arith.constant 0.000000e+00 : f32
      %20 = vector.broadcast %cst_14 : f32 to vector<16x128xf32>
      %21 = arith.cmpf ogt, %15, %20 : vector<16x128xf32>
      %22 = tpu.reciprocal %19 : vector<16x128xf32> -> vector<16x128xf32>
      %cst_15 = arith.constant 0.000000e+00 : f32
      %23 = vector.broadcast %cst_15 : f32 to vector<16x128xf32>
      %24 = arith.select %21, %22, %23 : vector<16x128xi1>, vector<16x128xf32>
      %c0_16 = arith.constant 0 : index
      %c0_17 = arith.constant 0 : index
      %25 = vector.load %arg4[%c0_16, %c0_17] : memref<128x128xf32, #tpu.memory_space<vmem>>, vector<128x128xf32>
      %cst_18 = arith.constant dense<0.000000e+00> : vector<16x128xf32>
      %26 = tpu.matmul %24, %25, %cst_18 {dimension_numbers = #tpu.dot_dimension_numbers<[1], [0], [0], [1], [0, 0, 1, 1], [], []>} : vector<16x128xf32>, vector<128x128xf32>, vector<16x128xf32> -> vector<16x128xf32>
      %27 = arith.mulf %14, %26 : vector<16x128xf32>
      %c0_19 = arith.constant 0 : index
      %c0_20 = arith.constant 0 : index
      %28 = vector.load %arg5[%c0_19, %c0_20] : memref<1x128xf32, #tpu.memory_space<vmem>>, vector<1x128xf32>
      %29 = vector.broadcast %28 : vector<1x128xf32> to vector<16x128xf32>
      %30 = arith.addf %27, %29 : vector<16x128xf32>
      %c0_21 = arith.constant 0 : index
      %c0_22 = arith.constant 0 : index
      %31 = vector.load %arg7[%c0_21, %c0_22] : memref<1x128xf32, #tpu.memory_space<vmem>>, vector<1x128xf32>
      %c0_23 = arith.constant 0 : index
      %c0_24 = arith.constant 0 : index
      %32 = vector.load %arg8[%c0_23, %c0_24] : memref<1x128xf32, #tpu.memory_space<vmem>>, vector<1x128xf32>
      %cst_25 = arith.constant dense<0.000000e+00> : vector<16xf32>
      %33 = vector.multi_reduction <add>, %30, %cst_25 [1] : vector<16x128xf32> to vector<16xf32>
      %34 = vector.shape_cast %33 : vector<16xf32> to vector<16x1xf32>
      %35 = arith.mulf %30, %30 : vector<16x128xf32>
      %cst_26 = arith.constant dense<0.000000e+00> : vector<16xf32>
      %36 = vector.multi_reduction <add>, %35, %cst_26 [1] : vector<16x128xf32> to vector<16xf32>
      %37 = vector.shape_cast %36 : vector<16xf32> to vector<16x1xf32>
      %cst_27 = arith.constant 3.125000e-02 : f32
      %38 = vector.broadcast %cst_27 : f32 to vector<16x1xf32>
      %39 = arith.mulf %34, %38 : vector<16x1xf32>
      %cst_28 = arith.constant 3.125000e-02 : f32
      %40 = vector.broadcast %cst_28 : f32 to vector<16x1xf32>
      %41 = arith.mulf %37, %40 : vector<16x1xf32>
      %42 = arith.mulf %39, %39 : vector<16x1xf32>
      %43 = arith.subf %41, %42 : vector<16x1xf32>
      %cst_29 = arith.constant 0.000000e+00 : f32
      %44 = vector.broadcast %cst_29 : f32 to vector<16x1xf32>
      %45 = arith.maximumf %43, %44 : vector<16x1xf32>
      %46 = vector.broadcast %39 : vector<16x1xf32> to vector<16x128xf32>
      %47 = arith.subf %30, %46 : vector<16x128xf32>
      %cst_30 = arith.constant 9.99999974E-6 : f32
      %48 = vector.broadcast %cst_30 : f32 to vector<16x1xf32>
      %49 = arith.addf %45, %48 : vector<16x1xf32>
      %50 = math.rsqrt %49 : vector<16x1xf32>
      %51 = vector.broadcast %50 : vector<16x1xf32> to vector<16x128xf32>
      %52 = arith.mulf %47, %51 : vector<16x128xf32>
      %53 = vector.broadcast %31 : vector<1x128xf32> to vector<16x128xf32>
      %54 = arith.mulf %52, %53 : vector<16x128xf32>
      %55 = vector.broadcast %32 : vector<1x128xf32> to vector<16x128xf32>
      %56 = arith.addf %54, %55 : vector<16x128xf32>
      %c0_31 = arith.constant 0 : index
      %c0_32 = arith.constant 0 : index
      %57 = vector.load %arg6[%c0_31, %c0_32] : memref<128x128xf32, #tpu.memory_space<vmem>>, vector<128x128xf32>
      %cst_33 = arith.constant dense<0.000000e+00> : vector<16x128xf32>
      %58 = tpu.matmul %56, %57, %cst_33 {dimension_numbers = #tpu.dot_dimension_numbers<[1], [0], [0], [1], [0, 0, 1, 1], [], []>} : vector<16x128xf32>, vector<128x128xf32>, vector<16x128xf32> -> vector<16x128xf32>
      %cst_34 = arith.constant 0.000000e+00 : f32
      %59 = vector.broadcast %cst_34 : f32 to vector<16x128xf32>
      %60 = arith.maximumf %58, %59 : vector<16x128xf32>
      %61 = arith.addf %56, %60 : vector<16x128xf32>
      %c0_35 = arith.constant 0 : index
      %c0_36 = arith.constant 0 : index
      %62 = vector.load %arg9[%c0_35, %c0_36] : memref<1x128xf32, #tpu.memory_space<vmem>>, vector<1x128xf32>
      %c0_37 = arith.constant 0 : index
      %c0_38 = arith.constant 0 : index
      %63 = vector.load %arg10[%c0_37, %c0_38] : memref<1x128xf32, #tpu.memory_space<vmem>>, vector<1x128xf32>
      %cst_39 = arith.constant dense<0.000000e+00> : vector<16xf32>
      %64 = vector.multi_reduction <add>, %61, %cst_39 [1] : vector<16x128xf32> to vector<16xf32>
      %65 = vector.shape_cast %64 : vector<16xf32> to vector<16x1xf32>
      %66 = arith.mulf %61, %61 : vector<16x128xf32>
      %cst_40 = arith.constant dense<0.000000e+00> : vector<16xf32>
      %67 = vector.multi_reduction <add>, %66, %cst_40 [1] : vector<16x128xf32> to vector<16xf32>
      %68 = vector.shape_cast %67 : vector<16xf32> to vector<16x1xf32>
      %cst_41 = arith.constant 3.125000e-02 : f32
      %69 = vector.broadcast %cst_41 : f32 to vector<16x1xf32>
      %70 = arith.mulf %65, %69 : vector<16x1xf32>
      %cst_42 = arith.constant 3.125000e-02 : f32
      %71 = vector.broadcast %cst_42 : f32 to vector<16x1xf32>
      %72 = arith.mulf %68, %71 : vector<16x1xf32>
      %73 = arith.mulf %70, %70 : vector<16x1xf32>
      %74 = arith.subf %72, %73 : vector<16x1xf32>
      %cst_43 = arith.constant 0.000000e+00 : f32
      %75 = vector.broadcast %cst_43 : f32 to vector<16x1xf32>
      %76 = arith.maximumf %74, %75 : vector<16x1xf32>
      %77 = vector.broadcast %70 : vector<16x1xf32> to vector<16x128xf32>
      %78 = arith.subf %61, %77 : vector<16x128xf32>
      %cst_44 = arith.constant 9.99999974E-6 : f32
      %79 = vector.broadcast %cst_44 : f32 to vector<16x1xf32>
      %80 = arith.addf %76, %79 : vector<16x1xf32>
      %81 = math.rsqrt %80 : vector<16x1xf32>
      %82 = vector.broadcast %81 : vector<16x1xf32> to vector<16x128xf32>
      %83 = arith.mulf %78, %82 : vector<16x128xf32>
      %84 = vector.broadcast %62 : vector<1x128xf32> to vector<16x128xf32>
      %85 = arith.mulf %83, %84 : vector<16x128xf32>
      %86 = vector.broadcast %63 : vector<1x128xf32> to vector<16x128xf32>
      %87 = arith.addf %85, %86 : vector<16x128xf32>
      %cst_45 = arith.constant 0.000000e+00 : f32
      %88 = vector.broadcast %cst_45 : f32 to vector<16x128xf32>
      %89 = arith.maximumf %87, %88 : vector<16x128xf32>
      %90 = arith.truncf %89 : vector<16x128xf32> to vector<16x128xbf16>
      %c0_46 = arith.constant 0 : index
      %c0_47 = arith.constant 0 : index
      %91 = vector.load %arg11[%c0_46, %c0_47] : memref<16x128xbf16, #tpu.memory_space<vmem>>, vector<16x128xbf16>
      tpu.vector_store %arg11[%c0_46, %c0_47], %90 {strides = array<i32>} : memref<16x128xbf16, #tpu.memory_space<vmem>>, vector<16x128xbf16>,
    } else {
    }
    return
  }
  func.func @transform_0(%arg0: i32, %arg1: i32) -> (i32, i32) {
    %c0_i32 = arith.constant 0 : i32
    return %arg0, %arg1 : i32, i32
  }
  func.func @transform_1(%arg0: i32, %arg1: i32) -> (i32, i32) {
    %c0_i32 = arith.constant 0 : i32
    %c0_i32_0 = arith.constant 0 : i32
    %c0_i32_1 = arith.constant 0 : i32
    return %c0_i32, %c0_i32_0 : i32, i32
  }
  func.func @transform_2(%arg0: i32, %arg1: i32) -> (i32, i32) {
    %c0_i32 = arith.constant 0 : i32
    %c0_i32_0 = arith.constant 0 : i32
    %c0_i32_1 = arith.constant 0 : i32
    return %c0_i32, %c0_i32_0 : i32, i32
  }
  func.func @transform_3(%arg0: i32, %arg1: i32) -> (i32, i32) {
    %c0_i32 = arith.constant 0 : i32
    %c0_i32_0 = arith.constant 0 : i32
    %c0_i32_1 = arith.constant 0 : i32
    return %c0_i32, %c0_i32_0 : i32, i32
  }
  func.func @transform_4(%arg0: i32, %arg1: i32) -> (i32, i32) {
    %c0_i32 = arith.constant 0 : i32
    %c0_i32_0 = arith.constant 0 : i32
    %c0_i32_1 = arith.constant 0 : i32
    return %c0_i32, %c0_i32_0 : i32, i32
  }
  func.func @transform_5(%arg0: i32, %arg1: i32) -> (i32, i32) {
    %c0_i32 = arith.constant 0 : i32
    %c0_i32_0 = arith.constant 0 : i32
    %c0_i32_1 = arith.constant 0 : i32
    return %c0_i32, %c0_i32_0 : i32, i32
  }
  func.func @transform_6(%arg0: i32, %arg1: i32) -> (i32, i32) {
    %c0_i32 = arith.constant 0 : i32
    %c0_i32_0 = arith.constant 0 : i32
    %c0_i32_1 = arith.constant 0 : i32
    return %c0_i32, %c0_i32_0 : i32, i32
  }
  func.func @transform_7(%arg0: i32, %arg1: i32) -> (i32, i32) {
    %c0_i32 = arith.constant 0 : i32
    %c0_i32_0 = arith.constant 0 : i32
    %c0_i32_1 = arith.constant 0 : i32
    return %c0_i32, %c0_i32_0 : i32, i32
  }
  func.func @transform_8(%arg0: i32, %arg1: i32) -> (i32, i32) {
    %c0_i32 = arith.constant 0 : i32
    %c0_i32_0 = arith.constant 0 : i32
    %c0_i32_1 = arith.constant 0 : i32
    return %c0_i32, %c0_i32_0 : i32, i32
  }
  func.func @transform_9(%arg0: i32, %arg1: i32) -> (i32, i32) {
    %c0_i32 = arith.constant 0 : i32
    %c0_i32_0 = arith.constant 0 : i32
    return %arg0, %c0_i32 : i32, i32
  }
}

</mosaic_0001>

<llo_original>
// kernel: allset_transformer_layer.3
$region0: #{allset_transformer_layer.3}
  #allocation0 [shape = 'u32[]', space=smem, size = 0x4, offset = 0x4, fixed_abs, tag = 'smem constant byte address 0x4 - core index']
  #allocation1 [shape = 'u32[72,128]{1,0:T(1,128)}', space=vmem, size = 0x9000, scoped, tag = 'internal scratch']
  #allocation2 [shape = 'f32[16,256]{1,0:T(8,128)}', space=vmem, size = 0x4000, scoped, tag = 'scratch operand']
  %s0 = inlined_call_operand.vmem [shape: s8[16,128], index: 0, kind: input, shape index: {}]
  %s1 = inlined_call_operand.vmem [shape: bf16[128,256], index: 1, kind: input, shape index: {}]
  %s2 = inlined_call_operand.vmem [shape: f32[128,128], index: 2, kind: input, shape index: {}]
  %s3 = inlined_call_operand.vmem [shape: f32[1,128], index: 3, kind: input, shape index: {}]
  %s4 = inlined_call_operand.vmem [shape: f32[128,128], index: 4, kind: input, shape index: {}]
  %s5 = inlined_call_operand.vmem [shape: f32[1,128], index: 5, kind: input, shape index: {}]
  %s6 = inlined_call_operand.vmem [shape: f32[1,128], index: 6, kind: input, shape index: {}]
  %s7 = inlined_call_operand.vmem [shape: f32[1,128], index: 7, kind: input, shape index: {}]
  %s8 = inlined_call_operand.vmem [shape: f32[1,128], index: 8, kind: input, shape index: {}]
  %s9 = inlined_call_operand.vmem [shape: bf16[16,128], index: 9, kind: output, shape index: {}]
  %s10 = sld [smem:[#allocation0]]
  $region54: #{allset_transformer_layer.3} parent=0
    _
  %s12 = ssub.s32 1, %s10
  %s13 = scalar_select 0, %s12, %s10
  // Predicated region
  $region2: #{allset_transformer_layer.3} parent=0 // pred_check
    _
  $region3: #{allset_transformer_layer.3} parent=0 // pred_check_branch
    %15 = sbr.rel (0) target = $region5
  $region4: #{allset_transformer_layer.3} parent=0 // pred_region
    _
  $region5: #{allset_transformer_layer.3} parent=0 // pred_fallthru
    _
  // Predicated region
  $region6: #{allset_transformer_layer.3} parent=0 // pred_check
    _
  $region7: #{allset_transformer_layer.3} parent=0 // pred_check_branch
    %17 = sbr.rel (0) target = $region9
  $region8: #{allset_transformer_layer.3} parent=0 // pred_region
    _
  $region9: #{allset_transformer_layer.3} parent=0 // pred_fallthru
    _
  // Predicated region
  $region10: #{allset_transformer_layer.3} parent=0 // pred_check
    _
  $region11: #{allset_transformer_layer.3} parent=0 // pred_check_branch
    %19 = sbr.rel (0) target = $region13
  $region12: #{allset_transformer_layer.3} parent=0 // pred_region
    _
  $region13: #{allset_transformer_layer.3} parent=0 // pred_fallthru
    _
  // Predicated region
  $region14: #{allset_transformer_layer.3} parent=0 // pred_check
    _
  $region15: #{allset_transformer_layer.3} parent=0 // pred_check_branch
    %21 = sbr.rel (0) target = $region17
  $region16: #{allset_transformer_layer.3} parent=0 // pred_region
    _
  $region17: #{allset_transformer_layer.3} parent=0 // pred_fallthru
    _
  // Predicated region
  $region18: #{allset_transformer_layer.3} parent=0 // pred_check
    _
  $region19: #{allset_transformer_layer.3} parent=0 // pred_check_branch
    %23 = sbr.rel (0) target = $region21
  $region20: #{allset_transformer_layer.3} parent=0 // pred_region
    _
  $region21: #{allset_transformer_layer.3} parent=0 // pred_fallthru
    _
  // Predicated region
  $region22: #{allset_transformer_layer.3} parent=0 // pred_check
    _
  $region23: #{allset_transformer_layer.3} parent=0 // pred_check_branch
    %25 = sbr.rel (0) target = $region25
  $region24: #{allset_transformer_layer.3} parent=0 // pred_region
    _
  $region25: #{allset_transformer_layer.3} parent=0 // pred_fallthru
    _
  // Predicated region
  $region26: #{allset_transformer_layer.3} parent=0 // pred_check
    _
  $region27: #{allset_transformer_layer.3} parent=0 // pred_check_branch
    %27 = sbr.rel (0) target = $region29
  $region28: #{allset_transformer_layer.3} parent=0 // pred_region
    _
  $region29: #{allset_transformer_layer.3} parent=0 // pred_fallthru
    _
  // Predicated region
  $region30: #{allset_transformer_layer.3} parent=0 // pred_check
    _
  $region31: #{allset_transformer_layer.3} parent=0 // pred_check_branch
    %29 = sbr.rel (0) target = $region33
  $region32: #{allset_transformer_layer.3} parent=0 // pred_region
    _
  $region33: #{allset_transformer_layer.3} parent=0 // pred_fallthru
    _
  // Predicated region
  $region34: #{allset_transformer_layer.3} parent=0 // pred_check
    _
  $region35: #{allset_transformer_layer.3} parent=0 // pred_check_branch
    %31 = sbr.rel (0) target = $region37
  $region36: #{allset_transformer_layer.3} parent=0 // pred_region
    _
  $region37: #{allset_transformer_layer.3} parent=0 // pred_fallthru
    _
  %p32 = scmp.eq.s32.totalorder 0, 0
  // Predicated region
  $region38: #{allset_transformer_layer.3} parent=0 // pred_check
    %p33 = pneg %p32
  $region39: #{allset_transformer_layer.3} parent=0 // pred_check_branch
    %35 = sbr.rel (%p33) target = $region41
  $region40: #{allset_transformer_layer.3} parent=0 // pred_region
    %36 = vst [vmem:[#allocation2] sm:$0xff] 0.0
    %37 = vst [vmem:[#allocation2 + $0x8] sm:$0xff] 0.0
    %38 = vst [vmem:[#allocation2 + $0x10] sm:$0xff] 0.0
    %39 = vst [vmem:[#allocation2 + $0x18] sm:$0xff] 0.0
  $region41: #{allset_transformer_layer.3} parent=0 // pred_fallthru
    _
  %v40 = vld [vmem:[%s0] sm:$0x3]
  %v41 = vld [vmem:[%s0 + $0x2] sm:$0x3]
  %v42 = vunpack.c.0.s8 %v40
  %v43 = vunpack.c.0.s8 %v41
  %v44 = vcvt.s32.f32 %v42
  %v45 = vcvt.s32.f32 %v43
  %v46 = vpack.c.bf16 %v45, %v44
  %v47 = vld [vmem:[#allocation2] sm:$0xff]
  %v48 = vld [vmem:[#allocation2 + $0x8] sm:$0xff]
  %v49 = vld [vmem:[#allocation2 + $0x10] sm:$0xff]
  %v50 = vld [vmem:[#allocation2 + $0x18] sm:$0xff]
  %v51 = vld [vmem:[%s1] sm:$0xff]
  %v52 = vld [vmem:[%s1 + $0x8] sm:$0xff]
  %v53 = vld [vmem:[%s1 + $0x10] sm:$0xff]
  %v54 = vld [vmem:[%s1 + $0x18] sm:$0xff]
  %v55 = vld [vmem:[%s1 + $0x20] sm:$0xff]
  %v56 = vld [vmem:[%s1 + $0x28] sm:$0xff]
  %v57 = vld [vmem:[%s1 + $0x30] sm:$0xff]
  %v58 = vld [vmem:[%s1 + $0x38] sm:$0xff]
  %v59 = vld [vmem:[%s1 + $0x40] sm:$0xff]
  %v60 = vld [vmem:[%s1 + $0x48] sm:$0xff]
  %v61 = vld [vmem:[%s1 + $0x50] sm:$0xff]
  %v62 = vld [vmem:[%s1 + $0x58] sm:$0xff]
  %v63 = vld [vmem:[%s1 + $0x60] sm:$0xff]
  %v64 = vld [vmem:[%s1 + $0x68] sm:$0xff]
  %v65 = vld [vmem:[%s1 + $0x70] sm:$0xff]
  %v66 = vld [vmem:[%s1 + $0x78] sm:$0xff]
  %v83 = vunpack.c.l.b16 %v51
  %v84 = vunpack.c.h.b16 %v51
  %v85 = vunpack.c.l.b16 %v52
  %v86 = vunpack.c.h.b16 %v52
  %v87 = vunpack.c.l.b16 %v53
  %v88 = vunpack.c.h.b16 %v53
  %v89 = vunpack.c.l.b16 %v54
  %v90 = vunpack.c.h.b16 %v54
  %v91 = vunpack.c.l.b16 %v55
  %v92 = vunpack.c.h.b16 %v55
  %v93 = vunpack.c.l.b16 %v56
  %v94 = vunpack.c.h.b16 %v56
  %v95 = vunpack.c.l.b16 %v57
  %v96 = vunpack.c.h.b16 %v57
  %v97 = vunpack.c.l.b16 %v58
  %v98 = vunpack.c.h.b16 %v58
  %v99 = vunpack.c.l.b16 %v59
  %v100 = vunpack.c.h.b16 %v59
  %v101 = vunpack.c.l.b16 %v60
  %v102 = vunpack.c.h.b16 %v60
  %v103 = vunpack.c.l.b16 %v61
  %v104 = vunpack.c.h.b16 %v61
  %v105 = vunpack.c.l.b16 %v62
  %v106 = vunpack.c.h.b16 %v62
  %v107 = vunpack.c.l.b16 %v63
  %v108 = vunpack.c.h.b16 %v63
  %v109 = vunpack.c.l.b16 %v64
  %v110 = vunpack.c.h.b16 %v64
  %v111 = vunpack.c.l.b16 %v65
  %v112 = vunpack.c.h.b16 %v65
  %v113 = vunpack.c.l.b16 %v66
  %v114 = vunpack.c.h.b16 %v66
  %v115 = vpack.c.b16 %v85, %v83
  %v116 = vpack.c.b16 %v86, %v84
  %v117 = vpack.c.b16 %v89, %v87
  %v118 = vpack.c.b16 %v90, %v88
  %v119 = vpack.c.b16 %v93, %v91
  %v120 = vpack.c.b16 %v94, %v92
  %v121 = vpack.c.b16 %v97, %v95
  %v122 = vpack.c.b16 %v98, %v96
  %v123 = vpack.c.b16 %v101, %v99
  %v124 = vpack.c.b16 %v102, %v100
  %v125 = vpack.c.b16 %v105, %v103
  %v126 = vpack.c.b16 %v106, %v104
  %v127 = vpack.c.b16 %v109, %v107
  %v128 = vpack.c.b16 %v110, %v108
  %v129 = vpack.c.b16 %v113, %v111
  %v130 = vpack.c.b16 %v114, %v112
  %147 = vmatpush.bf16.msra.mxu0 %v129
  %148 = vmatpush.bf16.msra.mxu0 %v127
  %149 = vmatpush.bf16.msra.mxu0 %v125
  %150 = vmatpush.bf16.msra.mxu0 %v123
  %151 = vmatpush.bf16.msra.mxu0 %v121
  %152 = vmatpush.bf16.msra.mxu0 %v119
  %153 = vmatpush.bf16.msra.mxu0 %v117
  %154 = vmatpush.bf16.msra.mxu0 %v115
  %155 = vmatmul.bf16.gmra.mxu0 %v46
  %v156 = vpop.f32.mrf.mxu0
  %v157 = vadd.f32 0.0, %v156
  %v158 = vpop.f32.mrf.mxu0
  %v159 = vadd.f32 0.0, %v158
  %160 = vdwg.mxu0
  %161 = vmatpush.bf16.msra.mxu0 %v130
  %162 = vmatpush.bf16.msra.mxu0 %v128
  %163 = vmatpush.bf16.msra.mxu0 %v126
  %164 = vmatpush.bf16.msra.mxu0 %v124
  %165 = vmatpush.bf16.msra.mxu0 %v122
  %166 = vmatpush.bf16.msra.mxu0 %v120
  %167 = vmatpush.bf16.msra.mxu0 %v118
  %168 = vmatpush.bf16.msra.mxu0 %v116
  %169 = vmatmul.bf16.gmra.mxu0 %v46
  %v170 = vpop.f32.mrf.mxu0
  %v171 = vadd.f32 0.0, %v170
  %v172 = vpop.f32.mrf.mxu0
  %v173 = vadd.f32 0.0, %v172
  %174 = vdwg.mxu0
  %v175 = vadd.f32 %v47, %v157
  %v176 = vadd.f32 %v48, %v171
  %v177 = vadd.f32 %v49, %v159
  %v178 = vadd.f32 %v50, %v173
  %179 = vst [vmem:[#allocation2] sm:$0xff] %v175
  %180 = vst [vmem:[#allocation2 + $0x8] sm:$0xff] %v176
  %181 = vst [vmem:[#allocation2 + $0x10] sm:$0xff] %v177
  %182 = vst [vmem:[#allocation2 + $0x18] sm:$0xff] %v178
  // Predicated region
  $region42: #{allset_transformer_layer.3} parent=0 // pred_check
    %p183 = pneg %p32
  $region43: #{allset_transformer_layer.3} parent=0 // pred_check_branch
    %185 = sbr.rel (%p183) target = $region45
  $region44: #{allset_transformer_layer.3} parent=0 // pred_region
    %v186 = vld [vmem:[#allocation2] sm:$0xff]
    %v187 = vld [vmem:[#allocation2 + $0x8] sm:$0xff]
    %v188 = vld [vmem:[#allocation2 + $0x10] sm:$0xff]
    %v189 = vld [vmem:[#allocation2 + $0x18] sm:$0xff]
    %vm190 = vcmp.gt.f32.partialorder %v187, 0.0
    %vm191 = vcmp.gt.f32.partialorder %v189, 0.0
    %v192 = vsel %vm190, %v187, 1.0
    %v193 = vsel %vm191, %v189, 1.0
    %v194 = vrcp.pop %v192
    %v195 = vmul.f32 %v192, %v194
    %v196 = vsub.f32 1.0, %v195
    %v197 = vmul.f32 %v194, %v196
    %v198 = vadd.f32 %v194, %v197
    %vm199 = vweird.f32 %v192
    %vm200 = vweird.f32 %v194
    %vm201 = vmor %vm199, %vm200
    %v202 = vsel %vm201, %v194, %v198
    %v203 = vand.u32 2147483647, %v192
    %vm204 = vcmp.eq.f32.partialorder %v203, 8.507059e+37
    %v205 = vand.u32 %v192, 2147483648
    %v206 = vor.u32 1.1754944e-38, %v205
    %v207 = vsel %vm204, %v206, %v202
    %v208 = vrcp.pop %v193
    %v209 = vmul.f32 %v193, %v208
    %v210 = vsub.f32 1.0, %v209
    %v211 = vmul.f32 %v208, %v210
    %v212 = vadd.f32 %v208, %v211
    %vm213 = vweird.f32 %v193
    %vm214 = vweird.f32 %v208
    %vm215 = vmor %vm213, %vm214
    %v216 = vsel %vm215, %v208, %v212
    %v217 = vand.u32 2147483647, %v193
    %vm218 = vcmp.eq.f32.partialorder %v217, 8.507059e+37
    %v219 = vand.u32 %v193, 2147483648
    %v220 = vor.u32 1.1754944e-38, %v219
    %v221 = vsel %vm218, %v220, %v216
    %v222 = vsel %vm190, %v207, 0.0
    %v223 = vsel %vm191, %v221, 0.0
    %v224 = vld [vmem:[%s2] sm:$0xff]
    %v225 = vld [vmem:[%s2 + $0x8] sm:$0xff]
    %v226 = vld [vmem:[%s2 + $0x10] sm:$0xff]
    %v227 = vld [vmem:[%s2 + $0x18] sm:$0xff]
    %v228 = vld [vmem:[%s2 + $0x20] sm:$0xff]
    %v229 = vld [vmem:[%s2 + $0x28] sm:$0xff]
    %v230 = vld [vmem:[%s2 + $0x30] sm:$0xff]
    %v231 = vld [vmem:[%s2 + $0x38] sm:$0xff]
    %v232 = vld [vmem:[%s2 + $0x40] sm:$0xff]
    %v233 = vld [vmem:[%s2 + $0x48] sm:$0xff]
    %v234 = vld [vmem:[%s2 + $0x50] sm:$0xff]
    %v235 = vld [vmem:[%s2 + $0x58] sm:$0xff]
    %v236 = vld [vmem:[%s2 + $0x60] sm:$0xff]
    %v237 = vld [vmem:[%s2 + $0x68] sm:$0xff]
    %v238 = vld [vmem:[%s2 + $0x70] sm:$0xff]
    %v239 = vld [vmem:[%s2 + $0x78] sm:$0xff]
    %240 = vmatpush.msra.mxu0 %v239
    %241 = vmatpush.msra.mxu0 %v238
    %242 = vmatpush.msra.mxu0 %v237
    %243 = vmatpush.msra.mxu0 %v236
    %244 = vmatpush.msra.mxu0 %v235
    %245 = vmatpush.msra.mxu0 %v234
    %246 = vmatpush.msra.mxu0 %v233
    %247 = vmatpush.msra.mxu0 %v232
    %248 = vmatpush.msra.mxu0 %v231
    %249 = vmatpush.msra.mxu0 %v230
    %250 = vmatpush.msra.mxu0 %v229
    %251 = vmatpush.msra.mxu0 %v228
    %252 = vmatpush.msra.mxu0 %v227
    %253 = vmatpush.msra.mxu0 %v226
    %254 = vmatpush.msra.mxu0 %v225
    %255 = vmatpush.msra.mxu0 %v224
    %256 = vmatmul.f32.gmra.mxu0 %v222
    %v257 = vpop.f32.mrf.mxu0
    %v258 = vadd.f32 0.0, %v257
    %259 = vmatmul.f32.gmra.mxu0 %v223
    %v260 = vpop.f32.mrf.mxu0
    %v261 = vadd.f32 0.0, %v260
    %262 = vdwg.mxu0
    %v263 = vmul.f32 %v186, %v258
    %v264 = vmul.f32 %v188, %v261
    %v265 = vld [vmem:[%s3] sm:$0x1]
    %v267 = vperm.slane %v265, 0
    %v269 = vadd.f32 %v263, %v267
    %v270 = vadd.f32 %v264, %v267
    %v271 = vld [vmem:[%s5] sm:$0x1]
    %v272 = vld [vmem:[%s6] sm:$0x1]
    %273 = vadd.xlane.f32.xlu0 %v269
    %v274 = vpop.xlane.xlu0 %273
    %275 = vadd.xlane.f32.xlu0 %v270
    %v276 = vpop.xlane.xlu0 %275
    %v277 = vmul.f32 %v269, %v269
    %v278 = vmul.f32 %v270, %v270
    %279 = vadd.xlane.f32.xlu0 %v277
    %v280 = vpop.xlane.xlu0 %279
    %281 = vadd.xlane.f32.xlu0 %v278
    %v282 = vpop.xlane.xlu0 %281
    %v283 = vmul.f32 %v274, 0.03125
    %v284 = vmul.f32 %v276, 0.03125
    %v285 = vmul.f32 %v280, 0.03125
    %v286 = vmul.f32 %v282, 0.03125
    %v287 = vmul.f32 %v283, %v283
    %v288 = vmul.f32 %v284, %v284
    %v289 = vsub.f32 %v285, %v287
    %v290 = vsub.f32 %v286, %v288
    %v291 = vmax.f32 %v289, 0.0
    %v292 = vmax.f32 %v290, 0.0
    %v293 = vsub.f32 %v269, %v283
    %v294 = vsub.f32 %v270, %v284
    %v295 = vadd.f32 %v291, 1e-05
    %v296 = vadd.f32 %v292, 1e-05
    %v297 = vrsqrt.pop %v295
    %v298 = vmul.f32 %v297, %v295
    %v299 = vmul.f32 %v298, %v297
    %v300 = vmul.f32 0.5, %v299
    %v301 = vsub.f32 1.5, %v300
    %v302 = vmul.f32 %v297, %v301
    %vm303 = vweird.f32 %v295
    %vm304 = vweird.f32 %v297
    %vm305 = vmor %vm303, %vm304
    %v306 = vsel %vm305, %v297, %v302
    %v307 = vrsqrt.pop %v296
    %v308 = vmul.f32 %v307, %v296
    %v309 = vmul.f32 %v308, %v307
    %v310 = vmul.f32 0.5, %v309
    %v311 = vsub.f32 1.5, %v310
    %v312 = vmul.f32 %v307, %v311
    %vm313 = vweird.f32 %v296
    %vm314 = vweird.f32 %v307
    %vm315 = vmor %vm313, %vm314
    %v316 = vsel %vm315, %v307, %v312
    %v317 = vmul.f32 %v293, %v306
    %v318 = vmul.f32 %v294, %v316
    %v320 = vperm.slane %v271, 0
    %v322 = vmul.f32 %v317, %v320
    %v323 = vmul.f32 %v318, %v320
    %v325 = vperm.slane %v272, 0
    %v327 = vadd.f32 %v322, %v325
    %v328 = vadd.f32 %v323, %v325
    %v329 = vld [vmem:[%s4] sm:$0xff]
    %v330 = vld [vmem:[%s4 + $0x8] sm:$0xff]
    %v331 = vld [vmem:[%s4 + $0x10] sm:$0xff]
    %v332 = vld [vmem:[%s4 + $0x18] sm:$0xff]
    %v333 = vld [vmem:[%s4 + $0x20] sm:$0xff]
    %v334 = vld [vmem:[%s4 + $0x28] sm:$0xff]
    %v335 = vld [vmem:[%s4 + $0x30] sm:$0xff]
    %v336 = vld [vmem:[%s4 + $0x38] sm:$0xff]
    %v337 = vld [vmem:[%s4 + $0x40] sm:$0xff]
    %v338 = vld [vmem:[%s4 + $0x48] sm:$0xff]
    %v339 = vld [vmem:[%s4 + $0x50] sm:$0xff]
    %v340 = vld [vmem:[%s4 + $0x58] sm:$0xff]
    %v341 = vld [vmem:[%s4 + $0x60] sm:$0xff]
    %v342 = vld [vmem:[%s4 + $0x68] sm:$0xff]
    %v343 = vld [vmem:[%s4 + $0x70] sm:$0xff]
    %v344 = vld [vmem:[%s4 + $0x78] sm:$0xff]
    %345 = vmatpush.msra.mxu0 %v344
    %346 = vmatpush.msra.mxu0 %v343
    %347 = vmatpush.msra.mxu0 %v342
    %348 = vmatpush.msra.mxu0 %v341
    %349 = vmatpush.msra.mxu0 %v340
    %350 = vmatpush.msra.mxu0 %v339
    %351 = vmatpush.msra.mxu0 %v338
    %352 = vmatpush.msra.mxu0 %v337
    %353 = vmatpush.msra.mxu0 %v336
    %354 = vmatpush.msra.mxu0 %v335
    %355 = vmatpush.msra.mxu0 %v334
    %356 = vmatpush.msra.mxu0 %v333
    %357 = vmatpush.msra.mxu0 %v332
    %358 = vmatpush.msra.mxu0 %v331
    %359 = vmatpush.msra.mxu0 %v330
    %360 = vmatpush.msra.mxu0 %v329
    %361 = vmatmul.f32.gmra.mxu0 %v327
    %v362 = vpop.f32.mrf.mxu0
    %v363 = vadd.f32 0.0, %v362
    %364 = vmatmul.f32.gmra.mxu0 %v328
    %v365 = vpop.f32.mrf.mxu0
    %v366 = vadd.f32 0.0, %v365
    %367 = vdwg.mxu0
    %v368 = vmax.f32 %v363, 0.0
    %v369 = vmax.f32 %v366, 0.0
    %v370 = vadd.f32 %v327, %v368
    %v371 = vadd.f32 %v328, %v369
    %v372 = vld [vmem:[%s7] sm:$0x1]
    %v373 = vld [vmem:[%s8] sm:$0x1]
    %374 = vadd.xlane.f32.xlu0 %v370
    %v375 = vpop.xlane.xlu0 %374
    %376 = vadd.xlane.f32.xlu0 %v371
    %v377 = vpop.xlane.xlu0 %376
    %v378 = vmul.f32 %v370, %v370
    %v379 = vmul.f32 %v371, %v371
    %380 = vadd.xlane.f32.xlu0 %v378
    %v381 = vpop.xlane.xlu0 %380
    %382 = vadd.xlane.f32.xlu0 %v379
    %v383 = vpop.xlane.xlu0 %382
    %v384 = vmul.f32 %v375, 0.03125
    %v385 = vmul.f32 %v377, 0.03125
    %v386 = vmul.f32 %v381, 0.03125
    %v387 = vmul.f32 %v383, 0.03125
    %v388 = vmul.f32 %v384, %v384
    %v389 = vmul.f32 %v385, %v385
    %v390 = vsub.f32 %v386, %v388
    %v391 = vsub.f32 %v387, %v389
    %v392 = vmax.f32 %v390, 0.0
    %v393 = vmax.f32 %v391, 0.0
    %v394 = vsub.f32 %v370, %v384
    %v395 = vsub.f32 %v371, %v385
    %v396 = vadd.f32 %v392, 1e-05
    %v397 = vadd.f32 %v393, 1e-05
    %v398 = vrsqrt.pop %v396
    %v399 = vmul.f32 %v398, %v396
    %v400 = vmul.f32 %v399, %v398
    %v401 = vmul.f32 0.5, %v400
    %v402 = vsub.f32 1.5, %v401
    %v403 = vmul.f32 %v398, %v402
    %vm404 = vweird.f32 %v396
    %vm405 = vweird.f32 %v398
    %vm406 = vmor %vm404, %vm405
    %v407 = vsel %vm406, %v398, %v403
    %v408 = vrsqrt.pop %v397
    %v409 = vmul.f32 %v408, %v397
    %v410 = vmul.f32 %v409, %v408
    %v411 = vmul.f32 0.5, %v410
    %v412 = vsub.f32 1.5, %v411
    %v413 = vmul.f32 %v408, %v412
    %vm414 = vweird.f32 %v397
    %vm415 = vweird.f32 %v408
    %vm416 = vmor %vm414, %vm415
    %v417 = vsel %vm416, %v408, %v413
    %v418 = vmul.f32 %v394, %v407
    %v419 = vmul.f32 %v395, %v417
    %v421 = vperm.slane %v372, 0
    %v423 = vmul.f32 %v418, %v421
    %v424 = vmul.f32 %v419, %v421
    %v426 = vperm.slane %v373, 0
    %v428 = vadd.f32 %v423, %v426
    %v429 = vadd.f32 %v424, %v426
    %v430 = vmax.f32 %v428, 0.0
    %v431 = vmax.f32 %v429, 0.0
    %v432 = vpack.c.bf16 %v430, %v430
    %v433 = vpack.c.bf16 %v431, %v431
    %434 = vst [vmem:[%s9] sm:$0xf] %v432
    %435 = vst [vmem:[%s9 + $0x4] sm:$0xf] %v433
  $region45: #{allset_transformer_layer.3} parent=0 // pred_fallthru
    _
  // Predicated region
  $region46: #{allset_transformer_layer.3} parent=0 // pred_check
    _
  $region47: #{allset_transformer_layer.3} parent=0 // pred_check_branch
    %437 = sbr.rel (0) target = $region49
  $region48: #{allset_transformer_layer.3} parent=0 // pred_region
    _
  $region49: #{allset_transformer_layer.3} parent=0 // pred_fallthru
    _
  // Predicated region
  $region50: #{allset_transformer_layer.3} parent=0 // pred_check
    _
  $region51: #{allset_transformer_layer.3} parent=0 // pred_check_branch
    %439 = sbr.rel (0) target = $region53
  $region52: #{allset_transformer_layer.3} parent=0 // pred_region
    _
  $region53: #{allset_transformer_layer.3} parent=0 // pred_fallthru
    _

// kernel: allset_transformer_layer.2
$region0: #{allset_transformer_layer.2}
  #allocation0 [shape = 'u32[]', space=smem, size = 0x4, offset = 0x4, fixed_abs, tag = 'smem constant byte address 0x4 - core index']
  #allocation1 [shape = 'u32[72,128]{1,0:T(1,128)}', space=vmem, size = 0x9000, scoped, tag = 'internal scratch']
  #allocation2 [shape = 'f32[8,256]{1,0:T(8,128)}', space=vmem, size = 0x2000, scoped, tag = 'scratch operand']
  %s0 = inlined_call_operand.vmem [shape: s8[8,128], index: 0, kind: input, shape index: {}]
  %s1 = inlined_call_operand.vmem [shape: bf16[128,256], index: 1, kind: input, shape index: {}]
  %s2 = inlined_call_operand.vmem [shape: f32[128,128], index: 2, kind: input, shape index: {}]
  %s3 = inlined_call_operand.vmem [shape: f32[1,128], index: 3, kind: input, shape index: {}]
  %s4 = inlined_call_operand.vmem [shape: f32[128,128], index: 4, kind: input, shape index: {}]
  %s5 = inlined_call_operand.vmem [shape: f32[1,128], index: 5, kind: input, shape index: {}]
  %s6 = inlined_call_operand.vmem [shape: f32[1,128], index: 6, kind: input, shape index: {}]
  %s7 = inlined_call_operand.vmem [shape: f32[1,128], index: 7, kind: input, shape index: {}]
  %s8 = inlined_call_operand.vmem [shape: f32[1,128], index: 8, kind: input, shape index: {}]
  %s9 = inlined_call_operand.vmem [shape: bf16[8,128], index: 9, kind: output, shape index: {}]
  %s10 = sld [smem:[#allocation0]]
  $region54: #{allset_transformer_layer.2} parent=0
    _
  %s12 = ssub.s32 1, %s10
  %s13 = scalar_select 0, %s12, %s10
  // Predicated region
  $region2: #{allset_transformer_layer.2} parent=0 // pred_check
    _
  $region3: #{allset_transformer_layer.2} parent=0 // pred_check_branch
    %15 = sbr.rel (0) target = $region5
  $region4: #{allset_transformer_layer.2} parent=0 // pred_region
    _
  $region5: #{allset_transformer_layer.2} parent=0 // pred_fallthru
    _
  // Predicated region
  $region6: #{allset_transformer_layer.2} parent=0 // pred_check
    _
  $region7: #{allset_transformer_layer.2} parent=0 // pred_check_branch
    %17 = sbr.rel (0) target = $region9
  $region8: #{allset_transformer_layer.2} parent=0 // pred_region
    _
  $region9: #{allset_transformer_layer.2} parent=0 // pred_fallthru
    _
  // Predicated region
  $region10: #{allset_transformer_layer.2} parent=0 // pred_check
    _
  $region11: #{allset_transformer_layer.2} parent=0 // pred_check_branch
    %19 = sbr.rel (0) target = $region13
  $region12: #{allset_transformer_layer.2} parent=0 // pred_region
    _
  $region13: #{allset_transformer_layer.2} parent=0 // pred_fallthru
    _
  // Predicated region
  $region14: #{allset_transformer_layer.2} parent=0 // pred_check
    _
  $region15: #{allset_transformer_layer.2} parent=0 // pred_check_branch
    %21 = sbr.rel (0) target = $region17
  $region16: #{allset_transformer_layer.2} parent=0 // pred_region
    _
  $region17: #{allset_transformer_layer.2} parent=0 // pred_fallthru
    _
  // Predicated region
  $region18: #{allset_transformer_layer.2} parent=0 // pred_check
    _
  $region19: #{allset_transformer_layer.2} parent=0 // pred_check_branch
    %23 = sbr.rel (0) target = $region21
  $region20: #{allset_transformer_layer.2} parent=0 // pred_region
    _
  $region21: #{allset_transformer_layer.2} parent=0 // pred_fallthru
    _
  // Predicated region
  $region22: #{allset_transformer_layer.2} parent=0 // pred_check
    _
  $region23: #{allset_transformer_layer.2} parent=0 // pred_check_branch
    %25 = sbr.rel (0) target = $region25
  $region24: #{allset_transformer_layer.2} parent=0 // pred_region
    _
  $region25: #{allset_transformer_layer.2} parent=0 // pred_fallthru
    _
  // Predicated region
  $region26: #{allset_transformer_layer.2} parent=0 // pred_check
    _
  $region27: #{allset_transformer_layer.2} parent=0 // pred_check_branch
    %27 = sbr.rel (0) target = $region29
  $region28: #{allset_transformer_layer.2} parent=0 // pred_region
    _
  $region29: #{allset_transformer_layer.2} parent=0 // pred_fallthru
    _
  // Predicated region
  $region30: #{allset_transformer_layer.2} parent=0 // pred_check
    _
  $region31: #{allset_transformer_layer.2} parent=0 // pred_check_branch
    %29 = sbr.rel (0) target = $region33
  $region32: #{allset_transformer_layer.2} parent=0 // pred_region
    _
  $region33: #{allset_transformer_layer.2} parent=0 // pred_fallthru
    _
  // Predicated region
  $region34: #{allset_transformer_layer.2} parent=0 // pred_check
    _
  $region35: #{allset_transformer_layer.2} parent=0 // pred_check_branch
    %31 = sbr.rel (0) target = $region37
  $region36: #{allset_transformer_layer.2} parent=0 // pred_region
    _
  $region37: #{allset_transformer_layer.2} parent=0 // pred_fallthru
    _
  %p32 = scmp.eq.s32.totalorder 0, 0
  // Predicated region
  $region38: #{allset_transformer_layer.2} parent=0 // pred_check
    %p33 = pneg %p32
  $region39: #{allset_transformer_layer.2} parent=0 // pred_check_branch
    %35 = sbr.rel (%p33) target = $region41
  $region40: #{allset_transformer_layer.2} parent=0 // pred_region
    %36 = vst [vmem:[#allocation2] sm:$0xff] 0.0
    %37 = vst [vmem:[#allocation2 + $0x8] sm:$0xff] 0.0
  $region41: #{allset_transformer_layer.2} parent=0 // pred_fallthru
    _
  %v38 = vld [vmem:[%s0] sm:$0x3]
  %v39 = vunpack.c.0.s8 %v38
  %v40 = vcvt.s32.f32 %v39
  %v41 = vpack.c.bf16 %v40, %v40
  %v42 = vld [vmem:[#allocation2] sm:$0xff]
  %v43 = vld [vmem:[#allocation2 + $0x8] sm:$0xff]
  %v44 = vld [vmem:[%s1] sm:$0xff]
  %v45 = vld [vmem:[%s1 + $0x8] sm:$0xff]
  %v46 = vld [vmem:[%s1 + $0x10] sm:$0xff]
  %v47 = vld [vmem:[%s1 + $0x18] sm:$0xff]
  %v48 = vld [vmem:[%s1 + $0x20] sm:$0xff]
  %v49 = vld [vmem:[%s1 + $0x28] sm:$0xff]
  %v50 = vld [vmem:[%s1 + $0x30] sm:$0xff]
  %v51 = vld [vmem:[%s1 + $0x38] sm:$0xff]
  %v52 = vld [vmem:[%s1 + $0x40] sm:$0xff]
  %v53 = vld [vmem:[%s1 + $0x48] sm:$0xff]
  %v54 = vld [vmem:[%s1 + $0x50] sm:$0xff]
  %v55 = vld [vmem:[%s1 + $0x58] sm:$0xff]
  %v56 = vld [vmem:[%s1 + $0x60] sm:$0xff]
  %v57 = vld [vmem:[%s1 + $0x68] sm:$0xff]
  %v58 = vld [vmem:[%s1 + $0x70] sm:$0xff]
  %v59 = vld [vmem:[%s1 + $0x78] sm:$0xff]
  %v76 = vunpack.c.l.b16 %v44
  %v77 = vunpack.c.h.b16 %v44
  %v78 = vunpack.c.l.b16 %v45
  %v79 = vunpack.c.h.b16 %v45
  %v80 = vunpack.c.l.b16 %v46
  %v81 = vunpack.c.h.b16 %v46
  %v82 = vunpack.c.l.b16 %v47
  %v83 = vunpack.c.h.b16 %v47
  %v84 = vunpack.c.l.b16 %v48
  %v85 = vunpack.c.h.b16 %v48
  %v86 = vunpack.c.l.b16 %v49
  %v87 = vunpack.c.h.b16 %v49
  %v88 = vunpack.c.l.b16 %v50
  %v89 = vunpack.c.h.b16 %v50
  %v90 = vunpack.c.l.b16 %v51
  %v91 = vunpack.c.h.b16 %v51
  %v92 = vunpack.c.l.b16 %v52
  %v93 = vunpack.c.h.b16 %v52
  %v94 = vunpack.c.l.b16 %v53
  %v95 = vunpack.c.h.b16 %v53
  %v96 = vunpack.c.l.b16 %v54
  %v97 = vunpack.c.h.b16 %v54
  %v98 = vunpack.c.l.b16 %v55
  %v99 = vunpack.c.h.b16 %v55
  %v100 = vunpack.c.l.b16 %v56
  %v101 = vunpack.c.h.b16 %v56
  %v102 = vunpack.c.l.b16 %v57
  %v103 = vunpack.c.h.b16 %v57
  %v104 = vunpack.c.l.b16 %v58
  %v105 = vunpack.c.h.b16 %v58
  %v106 = vunpack.c.l.b16 %v59
  %v107 = vunpack.c.h.b16 %v59
  %v108 = vpack.c.b16 %v78, %v76
  %v109 = vpack.c.b16 %v79, %v77
  %v110 = vpack.c.b16 %v82, %v80
  %v111 = vpack.c.b16 %v83, %v81
  %v112 = vpack.c.b16 %v86, %v84
  %v113 = vpack.c.b16 %v87, %v85
  %v114 = vpack.c.b16 %v90, %v88
  %v115 = vpack.c.b16 %v91, %v89
  %v116 = vpack.c.b16 %v94, %v92
  %v117 = vpack.c.b16 %v95, %v93
  %v118 = vpack.c.b16 %v98, %v96
  %v119 = vpack.c.b16 %v99, %v97
  %v120 = vpack.c.b16 %v102, %v100
  %v121 = vpack.c.b16 %v103, %v101
  %v122 = vpack.c.b16 %v106, %v104
  %v123 = vpack.c.b16 %v107, %v105
  %140 = vmatpush.bf16.msra.mxu0 %v122
  %141 = vmatpush.bf16.msra.mxu0 %v120
  %142 = vmatpush.bf16.msra.mxu0 %v118
  %143 = vmatpush.bf16.msra.mxu0 %v116
  %144 = vmatpush.bf16.msra.mxu0 %v114
  %145 = vmatpush.bf16.msra.mxu0 %v112
  %146 = vmatpush.bf16.msra.mxu0 %v110
  %147 = vmatpush.bf16.msra.mxu0 %v108
  %148 = vmatmul.bf16.gmra.mxu0 %v41
  %v149 = vpop.f32.mrf.mxu0
  %v150 = vadd.f32 0.0, %v149
  %v151 = vpop.f32.mrf.mxu0
  %152 = vdwg.mxu0
  %153 = vmatpush.bf16.msra.mxu0 %v123
  %154 = vmatpush.bf16.msra.mxu0 %v121
  %155 = vmatpush.bf16.msra.mxu0 %v119
  %156 = vmatpush.bf16.msra.mxu0 %v117
  %157 = vmatpush.bf16.msra.mxu0 %v115
  %158 = vmatpush.bf16.msra.mxu0 %v113
  %159 = vmatpush.bf16.msra.mxu0 %v111
  %160 = vmatpush.bf16.msra.mxu0 %v109
  %161 = vmatmul.bf16.gmra.mxu0 %v41
  %v162 = vpop.f32.mrf.mxu0
  %v163 = vadd.f32 0.0, %v162
  %v164 = vpop.f32.mrf.mxu0
  %165 = vdwg.mxu0
  %v166 = vadd.f32 %v42, %v150
  %v167 = vadd.f32 %v43, %v163
  %168 = vst [vmem:[#allocation2] sm:$0xff] %v166
  %169 = vst [vmem:[#allocation2 + $0x8] sm:$0xff] %v167
  // Predicated region
  $region42: #{allset_transformer_layer.2} parent=0 // pred_check
    %p170 = pneg %p32
  $region43: #{allset_transformer_layer.2} parent=0 // pred_check_branch
    %172 = sbr.rel (%p170) target = $region45
  $region44: #{allset_transformer_layer.2} parent=0 // pred_region
    %v173 = vld [vmem:[#allocation2] sm:$0xff]
    %v174 = vld [vmem:[#allocation2 + $0x8] sm:$0xff]
    %vm175 = vcmp.gt.f32.partialorder %v174, 0.0
    %v176 = vsel %vm175, %v174, 1.0
    %v177 = vrcp.pop %v176
    %v178 = vmul.f32 %v176, %v177
    %v179 = vsub.f32 1.0, %v178
    %v180 = vmul.f32 %v177, %v179
    %v181 = vadd.f32 %v177, %v180
    %vm182 = vweird.f32 %v176
    %vm183 = vweird.f32 %v177
    %vm184 = vmor %vm182, %vm183
    %v185 = vsel %vm184, %v177, %v181
    %v186 = vand.u32 2147483647, %v176
    %vm187 = vcmp.eq.f32.partialorder %v186, 8.507059e+37
    %v188 = vand.u32 %v176, 2147483648
    %v189 = vor.u32 1.1754944e-38, %v188
    %v190 = vsel %vm187, %v189, %v185
    %v191 = vsel %vm175, %v190, 0.0
    %v192 = vld [vmem:[%s2] sm:$0xff]
    %v193 = vld [vmem:[%s2 + $0x8] sm:$0xff]
    %v194 = vld [vmem:[%s2 + $0x10] sm:$0xff]
    %v195 = vld [vmem:[%s2 + $0x18] sm:$0xff]
    %v196 = vld [vmem:[%s2 + $0x20] sm:$0xff]
    %v197 = vld [vmem:[%s2 + $0x28] sm:$0xff]
    %v198 = vld [vmem:[%s2 + $0x30] sm:$0xff]
    %v199 = vld [vmem:[%s2 + $0x38] sm:$0xff]
    %v200 = vld [vmem:[%s2 + $0x40] sm:$0xff]
    %v201 = vld [vmem:[%s2 + $0x48] sm:$0xff]
    %v202 = vld [vmem:[%s2 + $0x50] sm:$0xff]
    %v203 = vld [vmem:[%s2 + $0x58] sm:$0xff]
    %v204 = vld [vmem:[%s2 + $0x60] sm:$0xff]
    %v205 = vld [vmem:[%s2 + $0x68] sm:$0xff]
    %v206 = vld [vmem:[%s2 + $0x70] sm:$0xff]
    %v207 = vld [vmem:[%s2 + $0x78] sm:$0xff]
    %208 = vmatpush.msra.mxu0 %v207
    %209 = vmatpush.msra.mxu0 %v206
    %210 = vmatpush.msra.mxu0 %v205
    %211 = vmatpush.msra.mxu0 %v204
    %212 = vmatpush.msra.mxu0 %v203
    %213 = vmatpush.msra.mxu0 %v202
    %214 = vmatpush.msra.mxu0 %v201
    %215 = vmatpush.msra.mxu0 %v200
    %216 = vmatpush.msra.mxu0 %v199
    %217 = vmatpush.msra.mxu0 %v198
    %218 = vmatpush.msra.mxu0 %v197
    %219 = vmatpush.msra.mxu0 %v196
    %220 = vmatpush.msra.mxu0 %v195
    %221 = vmatpush.msra.mxu0 %v194
    %222 = vmatpush.msra.mxu0 %v193
    %223 = vmatpush.msra.mxu0 %v192
    %224 = vmatmul.f32.gmra.mxu0 %v191
    %v225 = vpop.f32.mrf.mxu0
    %v226 = vadd.f32 0.0, %v225
    %227 = vdwg.mxu0
    %v228 = vmul.f32 %v173, %v226
    %v229 = vld [vmem:[%s3] sm:$0x1]
    %v231 = vperm.slane %v229, 0
    %v233 = vadd.f32 %v228, %v231
    %v234 = vld [vmem:[%s5] sm:$0x1]
    %v235 = vld [vmem:[%s6] sm:$0x1]
    %236 = vadd.xlane.f32.xlu0 %v233
    %v237 = vpop.xlane.xlu0 %236
    %v238 = vmul.f32 %v233, %v233
    %239 = vadd.xlane.f32.xlu0 %v238
    %v240 = vpop.xlane.xlu0 %239
    %v241 = vmul.f32 %v237, 0.03125
    %v242 = vmul.f32 %v240, 0.03125
    %v243 = vmul.f32 %v241, %v241
    %v244 = vsub.f32 %v242, %v243
    %v245 = vmax.f32 %v244, 0.0
    %v246 = vsub.f32 %v233, %v241
    %v247 = vadd.f32 %v245, 1e-05
    %v248 = vrsqrt.pop %v247
    %v249 = vmul.f32 %v248, %v247
    %v250 = vmul.f32 %v249, %v248
    %v251 = vmul.f32 0.5, %v250
    %v252 = vsub.f32 1.5, %v251
    %v253 = vmul.f32 %v248, %v252
    %vm254 = vweird.f32 %v247
    %vm255 = vweird.f32 %v248
    %vm256 = vmor %vm254, %vm255
    %v257 = vsel %vm256, %v248, %v253
    %v258 = vmul.f32 %v246, %v257
    %v260 = vperm.slane %v234, 0
    %v262 = vmul.f32 %v258, %v260
    %v264 = vperm.slane %v235, 0
    %v266 = vadd.f32 %v262, %v264
    %v267 = vld [vmem:[%s4] sm:$0xff]
    %v268 = vld [vmem:[%s4 + $0x8] sm:$0xff]
    %v269 = vld [vmem:[%s4 + $0x10] sm:$0xff]
    %v270 = vld [vmem:[%s4 + $0x18] sm:$0xff]
    %v271 = vld [vmem:[%s4 + $0x20] sm:$0xff]
    %v272 = vld [vmem:[%s4 + $0x28] sm:$0xff]
    %v273 = vld [vmem:[%s4 + $0x30] sm:$0xff]
    %v274 = vld [vmem:[%s4 + $0x38] sm:$0xff]
    %v275 = vld [vmem:[%s4 + $0x40] sm:$0xff]
    %v276 = vld [vmem:[%s4 + $0x48] sm:$0xff]
    %v277 = vld [vmem:[%s4 + $0x50] sm:$0xff]
    %v278 = vld [vmem:[%s4 + $0x58] sm:$0xff]
    %v279 = vld [vmem:[%s4 + $0x60] sm:$0xff]
    %v280 = vld [vmem:[%s4 + $0x68] sm:$0xff]
    %v281 = vld [vmem:[%s4 + $0x70] sm:$0xff]
    %v282 = vld [vmem:[%s4 + $0x78] sm:$0xff]
    %283 = vmatpush.msra.mxu0 %v282
    %284 = vmatpush.msra.mxu0 %v281
    %285 = vmatpush.msra.mxu0 %v280
    %286 = vmatpush.msra.mxu0 %v279
    %287 = vmatpush.msra.mxu0 %v278
    %288 = vmatpush.msra.mxu0 %v277
    %289 = vmatpush.msra.mxu0 %v276
    %290 = vmatpush.msra.mxu0 %v275
    %291 = vmatpush.msra.mxu0 %v274
    %292 = vmatpush.msra.mxu0 %v273
    %293 = vmatpush.msra.mxu0 %v272
    %294 = vmatpush.msra.mxu0 %v271
    %295 = vmatpush.msra.mxu0 %v270
    %296 = vmatpush.msra.mxu0 %v269
    %297 = vmatpush.msra.mxu0 %v268
    %298 = vmatpush.msra.mxu0 %v267
    %299 = vmatmul.f32.gmra.mxu0 %v266
    %v300 = vpop.f32.mrf.mxu0
    %v301 = vadd.f32 0.0, %v300
    %302 = vdwg.mxu0
    %v303 = vmax.f32 %v301, 0.0
    %v304 = vadd.f32 %v266, %v303
    %v305 = vld [vmem:[%s7] sm:$0x1]
    %v306 = vld [vmem:[%s8] sm:$0x1]
    %307 = vadd.xlane.f32.xlu0 %v304
    %v308 = vpop.xlane.xlu0 %307
    %v309 = vmul.f32 %v304, %v304
    %310 = vadd.xlane.f32.xlu0 %v309
    %v311 = vpop.xlane.xlu0 %310
    %v312 = vmul.f32 %v308, 0.03125
    %v313 = vmul.f32 %v311, 0.03125
    %v314 = vmul.f32 %v312, %v312
    %v315 = vsub.f32 %v313, %v314
    %v316 = vmax.f32 %v315, 0.0
    %v317 = vsub.f32 %v304, %v312
    %v318 = vadd.f32 %v316, 1e-05
    %v319 = vrsqrt.pop %v318
    %v320 = vmul.f32 %v319, %v318
    %v321 = vmul.f32 %v320, %v319
    %v322 = vmul.f32 0.5, %v321
    %v323 = vsub.f32 1.5, %v322
    %v324 = vmul.f32 %v319, %v323
    %vm325 = vweird.f32 %v318
    %vm326 = vweird.f32 %v319
    %vm327 = vmor %vm325, %vm326
    %v328 = vsel %vm327, %v319, %v324
    %v329 = vmul.f32 %v317, %v328
    %v331 = vperm.slane %v305, 0
    %v333 = vmul.f32 %v329, %v331
    %v335 = vperm.slane %v306, 0
    %v337 = vadd.f32 %v333, %v335
    %v338 = vmax.f32 %v337, 0.0
    %v339 = vpack.c.bf16 %v338, %v338
    %340 = vst [vmem:[%s9] sm:$0xf] %v339
  $region45: #{allset_transformer_layer.2} parent=0 // pred_fallthru
    _
  // Predicated region
  $region46: #{allset_transformer_layer.2} parent=0 // pred_check
    _
  $region47: #{allset_transformer_layer.2} parent=0 // pred_check_branch
    %342 = sbr.rel (0) target = $region49
  $region48: #{allset_transformer_layer.2} parent=0 // pred_region
    _
  $region49: #{allset_transformer_layer.2} parent=0 // pred_fallthru
    _
  // Predicated region
  $region50: #{allset_transformer_layer.2} parent=0 // pred_check
    _
  $region51: #{allset_transformer_layer.2} parent=0 // pred_check_branch
    %344 = sbr.rel (0) target = $region53
  $region52: #{allset_transformer_layer.2} parent=0 // pred_region
    _
  $region53: #{allset_transformer_layer.2} parent=0 // pred_fallthru
    _

</llo_original>
